<compile_context>
chip_gen: v6e
topology: v6e:2x2x1
jax: 0.10.0
libtpu: 0.0.40
codegen_flags: <defaults>
</compile_context>

<pallas_src>
import functools

import jax
import jax.numpy as jnp
from jax import lax
from jax.experimental import pallas as pl
from jax.experimental.pallas import tpu as pltpu


def _cdiv(a, b):
    return (a + b - 1) // b


def _round_down(x, m):
    return (x // m) * m


def _ce_loss_kernel(logit_ref, target_ref, out_ref, m_ref, l_ref, pick_ref, *,
                    n_rows, n_cols, block_rows, block_cols, nb,
                    mask_rows, mask_cols):
    pid_par = pl.program_id(0)     # megacore shard (parallel)
    pid_row = pl.program_id(1)     # row block within shard (arbitrary)
    pid_col = pl.program_id(2)     # class block (arbitrary, innermost)
    n_col_blocks = pl.num_programs(2)

    # Zero the resident per-shard partial-sum block once per parallel shard.
    @pl.when(jnp.logical_and(pid_row == 0, pid_col == 0))
    def _():
        out_ref[...] = jnp.zeros_like(out_ref)

    # Reset the online-logsumexp state at the start of every row block.
    @pl.when(pid_col == 0)
    def _():
        m_ref[...] = jnp.full_like(m_ref, -jnp.inf)
        l_ref[...] = jnp.zeros_like(l_ref)
        pick_ref[...] = jnp.zeros_like(pick_ref)

    logits = logit_ref[...].astype(jnp.float32)          # (tb, tc)
    tgt = target_ref[...]                                # (tb, 1) int32
    tb, tc = logits.shape

    col_ids = pid_col * block_cols + lax.broadcasted_iota(jnp.int32, (tb, tc), 1)
    if mask_cols:
        # Padded tail columns of the last class block: -inf -> exp contributes 0
        # and cannot become the row max (first class block is always fully valid).
        logits = jnp.where(col_ids < n_cols, logits, -jnp.inf)

    # Online (streaming) logsumexp across class blocks.
    m_old = m_ref[...]
    m_new = jnp.maximum(m_old, jnp.max(logits, axis=-1, keepdims=True))
    shifted = logits - m_new
    sum_exp = jnp.sum(jnp.exp(shifted), axis=-1, keepdims=True)
    l_ref[...] = jnp.exp(m_old - m_new) * l_ref[...] + sum_exp
    m_ref[...] = m_new

    # Target logit via one-hot compare (no gather on TPU); the target column
    # lands in exactly one class block, so a running sum picks it up.
    pick_ref[...] += jnp.sum(jnp.where(col_ids == tgt, logits, 0.0),
                             axis=-1, keepdims=True)

    # Finalize the row block exactly once, on the last class step.
    @pl.when(pid_col == n_col_blocks - 1)
    def _():
        per_row = m_ref[...] + jnp.log(l_ref[...]) - pick_ref[...]   # (tb, 1)
        if mask_rows:
            row_ids = ((pid_par * nb + pid_row) * block_rows
                       + lax.broadcasted_iota(jnp.int32, (tb, 1), 0))
            per_row = jnp.where(row_ids < n_rows, per_row, 0.0)
        out_ref[...] += jnp.sum(per_row)                 # broadcast onto (1,8,128)


def _fallback_ce(logit, target):
    """Fused XLA path for tiny problems (kernel launch would dominate)."""
    logit = logit.astype(jnp.float32)
    lse = jax.nn.logsumexp(logit, axis=-1)
    picked = jnp.take_along_axis(logit, target.astype(jnp.int32)[:, None], axis=-1)[:, 0]
    return jnp.mean(lse - picked)


def _vmem_capacity_bytes():
    try:
        return int(pltpu.get_tpu_info().vmem_capacity_bytes)
    except Exception:  # non-TPU trace / older jax: assume the smallest (v7x, 64 MiB)
        return 64 << 20


def _choose_tiles(n, c, itemsize):
    """Pick (tb, tc) from the class width and a VMEM budget."""
    rmult = 8 if itemsize >= 4 else (16 if itemsize == 2 else 32)  # sublane packing
    tile_elems = 512 * 1024          # ~2 MiB of f32 working set per logit tile
    row_cap = 4096
    if n * c <= tile_elems:
        return n, c                  # single full-extent block (always layout-legal)
    if c <= tile_elems // 256:       # full class axis still allows >=256-row blocks
        tc = c
    else:                            # class-axis tiling -> online logsumexp path
        tc = max(128, min(_round_down(c, 128), _round_down(tile_elems // 256, 128)))
    tb = max(rmult, min(_round_down(tile_elems // tc, rmult), row_cap))
    if tb >= n:
        tb = n
    return tb, tc


def val_loss_model_forward(idx, logit, target, *, block_rows=None, block_cols=None,
                           use_pallas=None):
    """JAX/Pallas equivalent of ValLossModel.forward(idx, logit, target).

    idx is ignored (as in the PyTorch module).  logit: (N, C) float,
    target: (N,) integer class indices.  Returns a float32 scalar mean CE loss.
    """
    del idx  # unused by the reference forward (self.head is also dead code)

    n, c = logit.shape
    if use_pallas is None:
        use_pallas = n * c > 4096    # tiny problems: fused XLA beats a kernel launch
    if not use_pallas:
        return _fallback_ce(logit, target)

    itemsize = jnp.dtype(logit.dtype).itemsize
    rmult = 8 if itemsize >= 4 else (16 if itemsize == 2 else 32)
    tb, tc = _choose_tiles(n, c, itemsize)
    if block_rows is not None:
        tb = min(block_rows, n)
        if tb != n:
            tb = max(rmult, _round_down(tb, rmult))
    if block_cols is not None:
        tc = min(block_cols, c)
        if tc != c:
            tc = max(128, _round_down(tc, 128))

    nb_total = _cdiv(n, tb)
    nc = _cdiv(c, tc)
    # v7x megacore: split the batch reduction across 2 TensorCores.  On single-TC
    # chips (v5e/v6e) the extra axis costs at most one fully-masked duplicate step.
    n_par = 2 if nb_total >= 2 else 1
    nb = _cdiv(nb_total, n_par)
    grid = (n_par, nb, nc)

    target2d = target.astype(jnp.int32).reshape(n, 1)

    def _row_block(p, b):
        # Clamp the ragged shard tail; clamped duplicates are fully row-masked.
        return jnp.minimum(p * nb + b, nb_total - 1)

    kernel = functools.partial(
        _ce_loss_kernel,
        n_rows=n, n_cols=c, block_rows=tb, block_cols=tc, nb=nb,
        mask_rows=(n % tb != 0) or (n_par * nb != nb_total),
        mask_cols=(c % tc != 0),
    )

    # VMEM: double-buffered input tiles + f32 working copies + scratch + headroom,
    # capped per-generation (v7x has only 64 MiB per core).
    tile_bytes = tb * tc * itemsize
    vmem_need = (2 * tile_bytes + 3 * tb * tc * 4 + 5 * tb * 4
                 + 2 * 8 * 128 * 4 + (2 << 20))
    vmem_limit = int(min(max(vmem_need, 16 << 20), int(0.9 * _vmem_capacity_bytes())))

    partials = pl.pallas_call(
        kernel,
        out_shape=jax.ShapeDtypeStruct((n_par, 8, 128), jnp.float32),
        grid_spec=pltpu.PrefetchScalarGridSpec(
            num_scalar_prefetch=0,
            grid=grid,
            in_specs=[
                pl.BlockSpec((tb, tc), lambda p, b, k: (_row_block(p, b), k)),
                pl.BlockSpec((tb, 1), lambda p, b, k: (_row_block(p, b), 0)),
            ],
            out_specs=pl.BlockSpec((1, 8, 128), lambda p, b, k: (p, 0, 0)),
            scratch_shapes=[
                pltpu.VMEM((tb, 1), jnp.float32),   # running row max
                pltpu.VMEM((tb, 1), jnp.float32),   # running sum-exp
                pltpu.VMEM((tb, 1), jnp.float32),   # running picked target logit
            ],
        ),
        compiler_params=pltpu.CompilerParams(
            dimension_semantics=("parallel", "arbitrary", "arbitrary"),
            vmem_limit_bytes=vmem_limit,
        ),
        cost_estimate=pl.CostEstimate(
            flops=6 * n * c,
            transcendentals=n * c,
            bytes_accessed=n * c * itemsize + n * 4 + n_par * 8 * 128 * 4,
        ),
    )(logit, target2d)

    # Per-shard partial sums live in lane-dense (8,128) slabs; reduce and take mean.
    return jnp.sum(partials[:, 0, 0]) * (1.0 / n)


def _ref_loss(logit, target):
    """Independent pure-JAX reference: mean CE with class-index targets."""
    logp = jax.nn.log_softmax(logit.astype(jnp.float32), axis=-1)
    return -jnp.mean(jnp.take_along_axis(logp, target.astype(jnp.int32)[:, None], axis=-1))


if __name__ == "__main__":
    key = jax.random.PRNGKey(0)
    k1, k2, k3, k4 = jax.random.split(key, 4)

    # Case 1: exercise the Pallas path with batch tiling, class tiling, ragged
    # tails on both axes and the 2-shard megacore split (forced small blocks).
    N1, C1 = 304, 272
    logit1 = jax.random.normal(k1, (N1, C1), dtype=jnp.float32)
    target1 = jax.random.randint(k2, (N1,), 0, C1, dtype=jnp.int32)
    idx1 = jnp.arange(N1, dtype=jnp.int32)
    loss1 = val_loss_model_forward(idx1, logit1, target1,
                                   block_rows=128, block_cols=128, use_pallas=True)
    loss1 = jax.block_until_ready(loss1)
    ref1 = _ref_loss(logit1, target1)
    assert loss1.shape == (), loss1.shape
    assert loss1.dtype == jnp.float32, loss1.dtype
    assert jnp.allclose(loss1, ref1, rtol=1e-5, atol=1e-5), (float(loss1), float(ref1))

    # Case 2: default auto-tiling Pallas path (bf16 logits, single full block).
    N3, C3 = 512, 384
    logit3 = jax.random.normal(k1, (N3, C3), dtype=jnp.bfloat16)
    target3 = jax.random.randint(k2, (N3,), 0, C3, dtype=jnp.int32)
    loss3 = jax.block_until_ready(val_loss_model_forward(None, logit3, target3))
    ref3 = _ref_loss(logit3, target3)
    assert jnp.allclose(loss3, ref3, rtol=2e-3, atol=2e-3), (float(loss3), float(ref3))

    # Case 3: module-sized tiny shape (head -> 4 classes); wrapper dispatches to
    # the fused XLA path because a kernel launch would dominate.
    N2, C2 = 8, 4
    logit2 = jax.random.normal(k3, (N2, C2), dtype=jnp.float32)
    target2 = jax.random.randint(k4, (N2,), 0, C2, dtype=jnp.int32)
    idx2 = jnp.arange(N2, dtype=jnp.int32)
    loss2 = jax.block_until_ready(val_loss_model_forward(idx2, logit2, target2))
    ref2 = _ref_loss(logit2, target2)
    assert jnp.allclose(loss2, ref2, rtol=1e-5, atol=1e-5), (float(loss2), float(ref2))

    print("KERNEL_OK")
</pallas_src>

<mosaic_0001>
module attributes {stable_mosaic.version = 11 : i64} {
  func.func @_ce_loss_kernel(%arg0: i32, %arg1: i32, %arg2: i32, %arg3: memref<128x128xf32, #tpu.memory_space<vmem>>, %arg4: memref<128x1xi32, #tpu.memory_space<vmem>>, %arg5: memref<1x8x128xf32, #tpu.memory_space<vmem>>, %arg6: memref<128x1xf32, #tpu.memory_space<vmem>>, %arg7: memref<128x1xf32, #tpu.memory_space<vmem>>, %arg8: memref<128x1xf32, #tpu.memory_space<vmem>>) attributes {dimension_semantics = [#tpu.dimension_semantics<parallel>, #tpu.dimension_semantics<arbitrary>, #tpu.dimension_semantics<arbitrary>], iteration_bounds = array<i64: 2, 2, 3>, scalar_prefetch = 0 : i64, scratch_operands = 3 : i64, tpu.core_type = #tpu.core_type<tc>, window_params = [{transform_indices = @transform_0, window_bounds = array<i64: 128, 128>}, {transform_indices = @transform_1, window_bounds = array<i64: 128, 1>}, {transform_indices = @transform_2, window_bounds = array<i64: 1, 8, 128>}]} {
    %c0_i32 = arith.constant 0 : i32
    %0 = arith.cmpi eq, %arg1, %c0_i32 : i32
    %c0_i32_0 = arith.constant 0 : i32
    %1 = arith.cmpi eq, %arg2, %c0_i32_0 : i32
    %2 = arith.andi %0, %1 : i1
    %3 = arith.extui %2 : i1 to i32
    %c0_i32_1 = arith.constant 0 : i32
    %4 = arith.cmpi ne, %3, %c0_i32_1 : i32
    scf.if %4 {
      %cst_24 = arith.constant 0.000000e+00 : f32
      %46 = vector.broadcast %cst_24 : f32 to vector<1x8x128xf32>
      %c0_25 = arith.constant 0 : index
      %c0_26 = arith.constant 0 : index
      %c0_27 = arith.constant 0 : index
      %47 = vector.load %arg5[%c0_25, %c0_26, %c0_27] : memref<1x8x128xf32, #tpu.memory_space<vmem>>, vector<1x8x128xf32>
      tpu.vector_store %arg5[%c0_25, %c0_26, %c0_27], %46 {strides = array<i32>} : memref<1x8x128xf32, #tpu.memory_space<vmem>>, vector<1x8x128xf32>,
    } else {
    }
    %c0_i32_2 = arith.constant 0 : i32
    %5 = arith.cmpi eq, %arg2, %c0_i32_2 : i32
    %6 = arith.extui %5 : i1 to i32
    %c0_i32_3 = arith.constant 0 : i32
    %7 = arith.cmpi ne, %6, %c0_i32_3 : i32
    scf.if %7 {
      %cst_24 = arith.constant 0xFF800000 : f32
      %46 = vector.broadcast %cst_24 : f32 to vector<128x1xf32>
      %c0_25 = arith.constant 0 : index
      %c0_26 = arith.constant 0 : index
      %47 = vector.load %arg6[%c0_25, %c0_26] : memref<128x1xf32, #tpu.memory_space<vmem>>, vector<128x1xf32>
      tpu.vector_store %arg6[%c0_25, %c0_26], %46 {strides = array<i32>} : memref<128x1xf32, #tpu.memory_space<vmem>>, vector<128x1xf32>,
      %cst_27 = arith.constant 0.000000e+00 : f32
      %48 = vector.broadcast %cst_27 : f32 to vector<128x1xf32>
      %c0_28 = arith.constant 0 : index
      %c0_29 = arith.constant 0 : index
      %49 = vector.load %arg7[%c0_28, %c0_29] : memref<128x1xf32, #tpu.memory_space<vmem>>, vector<128x1xf32>
      tpu.vector_store %arg7[%c0_28, %c0_29], %48 {strides = array<i32>} : memref<128x1xf32, #tpu.memory_space<vmem>>, vector<128x1xf32>,
      %cst_30 = arith.constant 0.000000e+00 : f32
      %50 = vector.broadcast %cst_30 : f32 to vector<128x1xf32>
      %c0_31 = arith.constant 0 : index
      %c0_32 = arith.constant 0 : index
      %51 = vector.load %arg8[%c0_31, %c0_32] : memref<128x1xf32, #tpu.memory_space<vmem>>, vector<128x1xf32>
      tpu.vector_store %arg8[%c0_31, %c0_32], %50 {strides = array<i32>} : memref<128x1xf32, #tpu.memory_space<vmem>>, vector<128x1xf32>,
    } else {
    }
    %c0 = arith.constant 0 : index
    %c0_4 = arith.constant 0 : index
    %8 = vector.load %arg3[%c0, %c0_4] : memref<128x128xf32, #tpu.memory_space<vmem>>, vector<128x128xf32>
    %c0_5 = arith.constant 0 : index
    %c0_6 = arith.constant 0 : index
    %9 = vector.load %arg4[%c0_5, %c0_6] : memref<128x1xi32, #tpu.memory_space<vmem>>, vector<128x1xi32>
    %c128_i32 = arith.constant 128 : i32
    %10 = arith.muli %arg2, %c128_i32 : i32
    %11 = tpu.iota {dimensions = array<i32: 1>} : vector<128x128xi32>
    %12 = vector.broadcast %10 : i32 to vector<128x128xi32>
    %13 = arith.addi %12, %11 : vector<128x128xi32>
    %c272_i32 = arith.constant 272 : i32
    %14 = vector.broadcast %c272_i32 : i32 to vector<128x128xi32>
    %15 = arith.cmpi slt, %13, %14 : vector<128x128xi32>
    %cst = arith.constant 0xFF800000 : f32
    %16 = vector.broadcast %cst : f32 to vector<128x128xf32>
    %17 = arith.select %15, %8, %16 : vector<128x128xi1>, vector<128x128xf32>
    %c0_7 = arith.constant 0 : index
    %c0_8 = arith.constant 0 : index
    %18 = vector.load %arg6[%c0_7, %c0_8] : memref<128x1xf32, #tpu.memory_space<vmem>>, vector<128x1xf32>
    %cst_9 = arith.constant dense<0xFF800000> : vector<128xf32>
    %19 = vector.multi_reduction <maximumf>, %17, %cst_9 [1] : vector<128x128xf32> to vector<128xf32>
    %20 = vector.shape_cast %19 : vector<128xf32> to vector<128x1xf32>
    %21 = arith.maximumf %18, %20 : vector<128x1xf32>
    %22 = vector.broadcast %21 : vector<128x1xf32> to vector<128x128xf32>
    %23 = arith.subf %17, %22 : vector<128x128xf32>
    %24 = math.exp %23 : vector<128x128xf32>
    %cst_10 = arith.constant dense<0.000000e+00> : vector<128xf32>
    %25 = vector.multi_reduction <add>, %24, %cst_10 [1] : vector<128x128xf32> to vector<128xf32>
    %26 = vector.shape_cast %25 : vector<128xf32> to vector<128x1xf32>
    %27 = arith.subf %18, %21 : vector<128x1xf32>
    %28 = math.exp %27 : vector<128x1xf32>
    %c0_11 = arith.constant 0 : index
    %c0_12 = arith.constant 0 : index
    %29 = vector.load %arg7[%c0_11, %c0_12] : memref<128x1xf32, #tpu.memory_space<vmem>>, vector<128x1xf32>
    %30 = arith.mulf %28, %29 : vector<128x1xf32>
    %31 = arith.addf %30, %26 : vector<128x1xf32>
    %c0_13 = arith.constant 0 : index
    %c0_14 = arith.constant 0 : index
    %32 = vector.load %arg7[%c0_13, %c0_14] : memref<128x1xf32, #tpu.memory_space<vmem>>, vector<128x1xf32>
    tpu.vector_store %arg7[%c0_13, %c0_14], %31 {strides = array<i32>} : memref<128x1xf32, #tpu.memory_space<vmem>>, vector<128x1xf32>,
    %c0_15 = arith.constant 0 : index
    %c0_16 = arith.constant 0 : index
    %33 = vector.load %arg6[%c0_15, %c0_16] : memref<128x1xf32, #tpu.memory_space<vmem>>, vector<128x1xf32>
    tpu.vector_store %arg6[%c0_15, %c0_16], %21 {strides = array<i32>} : memref<128x1xf32, #tpu.memory_space<vmem>>, vector<128x1xf32>,
    %c0_17 = arith.constant 0 : index
    %c0_18 = arith.constant 0 : index
    %34 = vector.load %arg8[%c0_17, %c0_18] : memref<128x1xf32, #tpu.memory_space<vmem>>, vector<128x1xf32>
    %35 = vector.broadcast %9 : vector<128x1xi32> to vector<128x128xi32>
    %36 = arith.cmpi eq, %13, %35 : vector<128x128xi32>
    %cst_19 = arith.constant 0.000000e+00 : f32
    %37 = vector.broadcast %cst_19 : f32 to vector<128x128xf32>
    %38 = arith.select %36, %17, %37 : vector<128x128xi1>, vector<128x128xf32>
    %cst_20 = arith.constant dense<0.000000e+00> : vector<128xf32>
    %39 = vector.multi_reduction <add>, %38, %cst_20 [1] : vector<128x128xf32> to vector<128xf32>
    %40 = vector.shape_cast %39 : vector<128xf32> to vector<128x1xf32>
    %41 = arith.addf %34, %40 : vector<128x1xf32>
    %c0_21 = arith.constant 0 : index
    %c0_22 = arith.constant 0 : index
    %42 = vector.load %arg8[%c0_21, %c0_22] : memref<128x1xf32, #tpu.memory_space<vmem>>, vector<128x1xf32>
    tpu.vector_store %arg8[%c0_21, %c0_22], %41 {strides = array<i32>} : memref<128x1xf32, #tpu.memory_space<vmem>>, vector<128x1xf32>,
    %c2_i32 = arith.constant 2 : i32
    %43 = arith.cmpi eq, %arg2, %c2_i32 : i32
    %44 = arith.extui %43 : i1 to i32
    %c0_i32_23 = arith.constant 0 : i32
    %45 = arith.cmpi ne, %44, %c0_i32_23 : i32
    scf.if %45 {
      %c0_24 = arith.constant 0 : index
      %c0_25 = arith.constant 0 : index
      %46 = vector.load %arg6[%c0_24, %c0_25] : memref<128x1xf32, #tpu.memory_space<vmem>>, vector<128x1xf32>
      %c0_26 = arith.constant 0 : index
      %c0_27 = arith.constant 0 : index
      %47 = vector.load %arg7[%c0_26, %c0_27] : memref<128x1xf32, #tpu.memory_space<vmem>>, vector<128x1xf32>
      %48 = math.log %47 : vector<128x1xf32>
      %49 = arith.addf %46, %48 : vector<128x1xf32>
      %c0_28 = arith.constant 0 : index
      %c0_29 = arith.constant 0 : index
      %50 = vector.load %arg8[%c0_28, %c0_29] : memref<128x1xf32, #tpu.memory_space<vmem>>, vector<128x1xf32>
      %51 = arith.subf %49, %50 : vector<128x1xf32>
      %c2_i32_30 = arith.constant 2 : i32
      %52 = arith.muli %arg0, %c2_i32_30 : i32
      %53 = arith.addi %52, %arg1 : i32
      %c128_i32_31 = arith.constant 128 : i32
      %54 = arith.muli %53, %c128_i32_31 : i32
      %55 = tpu.iota {dimensions = array<i32: 0>} : vector<128x1xi32>
      %56 = vector.broadcast %54 : i32 to vector<128x1xi32>
      %57 = arith.addi %56, %55 : vector<128x1xi32>
      %c304_i32 = arith.constant 304 : i32
      %58 = vector.broadcast %c304_i32 : i32 to vector<128x1xi32>
      %59 = arith.cmpi slt, %57, %58 : vector<128x1xi32>
      %cst_32 = arith.constant 0.000000e+00 : f32
      %60 = vector.broadcast %cst_32 : f32 to vector<128x1xf32>
      %61 = arith.select %59, %51, %60 : vector<128x1xi1>, vector<128x1xf32>
      %c0_33 = arith.constant 0 : index
      %c0_34 = arith.constant 0 : index
      %c0_35 = arith.constant 0 : index
      %62 = vector.load %arg5[%c0_33, %c0_34, %c0_35] : memref<1x8x128xf32, #tpu.memory_space<vmem>>, vector<1x8x128xf32>
      %63 = vector.shape_cast %61 : vector<128x1xf32> to vector<1x128x1xf32>
      %cst_36 = arith.constant dense<0.000000e+00> : vector<1xf32>
      %64 = vector.multi_reduction <add>, %63, %cst_36 [1, 2] : vector<1x128x1xf32> to vector<1xf32>
      %65 = vector.shape_cast %64 : vector<1xf32> to vector<1x1x1xf32>
      %66 = vector.extract %65[0, 0, 0] : f32 from vector<1x1x1xf32>
      %67 = vector.broadcast %66 : f32 to vector<1x8x128xf32>
      %68 = arith.addf %62, %67 : vector<1x8x128xf32>
      %c0_37 = arith.constant 0 : index
      %c0_38 = arith.constant 0 : index
      %c0_39 = arith.constant 0 : index
      %69 = vector.load %arg5[%c0_37, %c0_38, %c0_39] : memref<1x8x128xf32, #tpu.memory_space<vmem>>, vector<1x8x128xf32>
      tpu.vector_store %arg5[%c0_37, %c0_38, %c0_39], %68 {strides = array<i32>} : memref<1x8x128xf32, #tpu.memory_space<vmem>>, vector<1x8x128xf32>,
    } else {
    }
    return
  }
  func.func @transform_0(%arg0: i32, %arg1: i32, %arg2: i32) -> (i32, i32) {
    %c2_i32 = arith.constant 2 : i32
    %0 = arith.muli %arg0, %c2_i32 : i32
    %1 = arith.addi %0, %arg1 : i32
    %c2_i32_0 = arith.constant 2 : i32
    %2 = arith.minsi %1, %c2_i32_0 : i32
    %c0_i32 = arith.constant 0 : i32
    return %2, %arg2 : i32, i32
  }
  func.func @transform_1(%arg0: i32, %arg1: i32, %arg2: i32) -> (i32, i32) {
    %c2_i32 = arith.constant 2 : i32
    %0 = arith.muli %arg0, %c2_i32 : i32
    %1 = arith.addi %0, %arg1 : i32
    %c2_i32_0 = arith.constant 2 : i32
    %2 = arith.minsi %1, %c2_i32_0 : i32
    %c0_i32 = arith.constant 0 : i32
    %c0_i32_1 = arith.constant 0 : i32
    return %2, %c0_i32 : i32, i32
  }
  func.func @transform_2(%arg0: i32, %arg1: i32, %arg2: i32) -> (i32, i32, i32) {
    %c0_i32 = arith.constant 0 : i32
    %c0_i32_0 = arith.constant 0 : i32
    %c0_i32_1 = arith.constant 0 : i32
    return %arg0, %c0_i32, %c0_i32_0 : i32, i32, i32
  }
}

</mosaic_0001>

<llo_original>
// kernel: tpu_custom_call.1
$region0: #{tpu_custom_call.1}
  #allocation0 [shape = 'u32[]', space=smem, size = 0x4, offset = 0x4, fixed_abs, tag = 'smem constant byte address 0x4 - core index']
  #allocation1 [shape = 'u32[144,128]{1,0:T(1,128)}', space=vmem, size = 0x12000, scoped, tag = 'internal scratch']
  #allocation2 [shape = 'f32[128,1]{1,0:T(8,128)}', space=vmem, size = 0x10000, scoped, tag = 'scratch operand']
  #allocation3 [shape = 'f32[128,1]{1,0:T(8,128)}', space=vmem, size = 0x10000, scoped, tag = 'scratch operand']
  #allocation4 [shape = 'f32[128,1]{1,0:T(8,128)}', space=vmem, size = 0x10000, scoped, tag = 'scratch operand']
  %s0 = inlined_call_operand.vmem [shape: f32[304,272], index: 0, kind: input, shape index: {}]
  %s1 = inlined_call_operand.vmem [shape: s32[304,1], index: 1, kind: input, shape index: {}]
  %s2 = inlined_call_operand.hbm [shape: f32[2,8,128], index: 2, kind: output, shape index: {}]
  %s3 = sld [smem:[#allocation0]]
  $region105: #{tpu_custom_call.1} parent=0
    _
  %s5 = ssub.s32 1, %s3
  %s6 = scalar_select 0, %s5, %s3
  $region1: #{tpu_custom_call.1} parent=0
    #allocation5 [shape = 'u8[131072]{0}', space=vmem, size = 0x20000, scoped, tag = 'input window, operand 0']
    #allocation6 [shape = 'u8[8192]{0}', space=vmem, size = 0x2000, scoped, tag = 'output window, operand 0']
    #allocation7 [shape = 's32[2]{0}', space=sflag, size = 0x8, scoped, tag = 'scoped memory for tpu_custom_call.1']
    %7 = vsyncpa [#allocation7], 0
    %s8 = scalar_lea.sflag [#allocation7], 1
    %9 = vsyncpa %s8, 0
    loop: start=0, step=1, limit=14
    $region2: #{tpu_custom_call.1} parent=1 // loop_pre_header
      _
    $region3: #{tpu_custom_call.1} parent=1 // loop_header
      %s11 = sphi 0, %s15
      %p12 = scmp.ge.s32.totalorder %s11, 14
      %s18 = sphi 0, %s37
      %s19 = sphi 0, %s33
      %s20 = sphi 0, %s29
      %s21 = sphi 0, %s18
      %s22 = sphi 0, %s19
      %s23 = sphi 0, %s20
      %s24 = sphi 0, %s21
      %s25 = sphi 0, %s22
      %s26 = sphi 0, %s23
      %s50 = sphi 0, %s52
      %s53 = sphi 0, %s50
      %s54 = sphi 0, %s53
      %s70 = sphi 0, %s54
      %s84 = sphi 0, %s86
      %s87 = sphi 0, %s84
      %s88 = sphi 0, %s87
      %s104 = sphi 0, %s88
      %s110 = sphi 0, %s112
      %s113 = sphi 0, %s110
      %s114 = sphi 0, %s113
      %s130 = sphi 0, %s114
    $region4: #{tpu_custom_call.1} parent=1 // loop_header_branch
      %14 = sbr.rel (%p12) target = $region8
    $region5: #{tpu_custom_call.1} parent=1 // loop_body
      %s16 = ssub.s32 %s11, 1
      %s17 = ssub.s32 %s11, 2
      %s27 = sadd.s32 1, %s20
      %p28 = scmp.ge.s32.totalorder %s27, 3
      %s29 = scalar_select %p28, 0, %s27
      %s30 = sadd.s32 1, %s19
      %s31 = scalar_select %p28, %s30, %s19
      %p32 = scmp.ge.s32.totalorder %s31, 2
      %s33 = scalar_select %p32, 0, %s31
      %s34 = sadd.s32 1, %s18
      %s35 = scalar_select %p32, %s34, %s18
      %p36 = scmp.ge.s32.totalorder %s35, 2
      %s37 = scalar_select %p36, 0, %s35
      %s38 = smul.u32 %s18, 2
      %s39 = sadd.s32 %s38, %s19
      %p40 = scmp.lt.s32.totalorder %s39, 2
      %s41 = scalar_select %p40, %s39, 2
      %s42 = smul.u32 %s37, 2
      %s43 = sadd.s32 %s42, %s33
      %p44 = scmp.lt.s32.totalorder %s43, 2
      %s45 = scalar_select %p44, %s43, 2
      %s46 = ssub.s32 %s41, %s45
      %s47 = ssub.s32 %s20, %s29
      %s48 = sor.u32 %s46, %s47
      %p49 = scmp.eq.s32.totalorder %s48, 0
      %s51 = sadd.s32 %s50, 1
      %s52 = scalar_select %p49, %s50, %s51
      %p55 = pneg %p49
      %p56 = scmp.eq.s32.totalorder %s11, 11
      %p57 = por %p55, %p56
      %p58 = scmp.ne.s32.totalorder %s50, %s53
      %p59 = scmp.eq.s32.totalorder %s11, 0
      %p60 = por %p58, %p59
      %p61 = scmp.ne.s32.totalorder %s50, %s53
      %p62 = scmp.eq.s32.totalorder %s16, 11
      %p63 = por %p61, %p62
      %p64 = scmp.ne.s32.totalorder %s53, %s54
      %p65 = scmp.eq.s32.totalorder %s16, 0
      %p66 = por %p64, %p65
      %p67 = scmp.ne.s32.totalorder %s53, %s54
      %p68 = scmp.eq.s32.totalorder %s17, 11
      %p69 = por %p67, %p68
      %p71 = scmp.ne.s32.totalorder %s54, %s70
      %p72 = scmp.eq.s32.totalorder %s17, 0
      %p73 = por %p71, %p72
      %s74 = smul.u32 %s18, 2
      %s75 = sadd.s32 %s74, %s19
      %p76 = scmp.lt.s32.totalorder %s75, 2
      %s77 = scalar_select %p76, %s75, 2
      %s78 = smul.u32 %s37, 2
      %s79 = sadd.s32 %s78, %s33
      %p80 = scmp.lt.s32.totalorder %s79, 2
      %s81 = scalar_select %p80, %s79, 2
      %s82 = ssub.s32 %s77, %s81
      %p83 = scmp.eq.s32.totalorder %s82, 0
      %s85 = sadd.s32 %s84, 1
      %s86 = scalar_select %p83, %s84, %s85
      %p89 = pneg %p83
      %p90 = scmp.eq.s32.totalorder %s11, 11
      %p91 = por %p89, %p90
      %p92 = scmp.ne.s32.totalorder %s84, %s87
      %p93 = scmp.eq.s32.totalorder %s11, 0
      %p94 = por %p92, %p93
      %p95 = scmp.ne.s32.totalorder %s84, %s87
      %p96 = scmp.eq.s32.totalorder %s16, 11
      %p97 = por %p95, %p96
      %p98 = scmp.ne.s32.totalorder %s87, %s88
      %p99 = scmp.eq.s32.totalorder %s16, 0
      %p100 = por %p98, %p99
      %p101 = scmp.ne.s32.totalorder %s87, %s88
      %p102 = scmp.eq.s32.totalorder %s17, 11
      %p103 = por %p101, %p102
      %p105 = scmp.ne.s32.totalorder %s88, %s104
      %p106 = scmp.eq.s32.totalorder %s17, 0
      %p107 = por %p105, %p106
      %s108 = ssub.s32 %s18, %s37
      %p109 = scmp.eq.s32.totalorder %s108, 0
      %s111 = sadd.s32 %s110, 1
      %s112 = scalar_select %p109, %s110, %s111
      %p115 = pneg %p109
      %p116 = scmp.eq.s32.totalorder %s11, 11
      %p117 = por %p115, %p116
      %p118 = scmp.ne.s32.totalorder %s110, %s113
      %p119 = scmp.eq.s32.totalorder %s11, 0
      %p120 = por %p118, %p119
      %p121 = scmp.ne.s32.totalorder %s110, %s113
      %p122 = scmp.eq.s32.totalorder %s16, 11
      %p123 = por %p121, %p122
      %p124 = scmp.ne.s32.totalorder %s113, %s114
      %p125 = scmp.eq.s32.totalorder %s16, 0
      %p126 = por %p124, %p125
      %p127 = scmp.ne.s32.totalorder %s113, %s114
      %p128 = scmp.eq.s32.totalorder %s17, 11
      %p129 = por %p127, %p128
      %p131 = scmp.ne.s32.totalorder %s114, %s130
      %p132 = scmp.eq.s32.totalorder %s17, 0
      %p133 = por %p131, %p132
      %p134 = scmp.le.s32.totalorder 1, %s11
      %p135 = scmp.lt.s32.totalorder %s11, 13
      %p136 = pnand %p134, %p135
      %p137 = pneg %p136
      // Predicated region
      $region9: #{tpu_custom_call.1} parent=5 // pred_check
        _
      $region10: #{tpu_custom_call.1} parent=5 // pred_check_branch
        %139 = sbr.rel (%p136) target = $region12
      $region11: #{tpu_custom_call.1} parent=5 // pred_region
        %s140 = ssub.s32 %s11, 1
      $region12: #{tpu_custom_call.1} parent=5 // pred_fallthru
        _
      %p141 = scmp.lt.s32.totalorder %s11, 12
      // Predicated region
      $region13: #{tpu_custom_call.1} parent=5 // pred_check
        %p142 = pneg %p141
      $region14: #{tpu_custom_call.1} parent=5 // pred_check_branch
        %144 = sbr.rel (%p142) target = $region16
      $region15: #{tpu_custom_call.1} parent=5 // pred_region
        // Predicated region
        $region17: #{tpu_custom_call.1} parent=15 // pred_check
          %p145 = pneg %p60
        $region18: #{tpu_custom_call.1} parent=15 // pred_check_branch
          %147 = sbr.rel (%p145) target = $region20
        $region19: #{tpu_custom_call.1} parent=15 // pred_region
          %s148 = sand.u32 %s50, 1
          %s149 = sand.u32 %s50, 1
          %s150 = smul.addr %s149, 128
          %s151 = scalar_lea.vmem [#allocation5], %s150
          %s152 = smul.u32 %s18, 2
          %s153 = sadd.s32 %s152, %s19
          %p154 = scmp.lt.s32.totalorder %s153, 2
          %s155 = scalar_select %p154, %s153, 2
          %s156 = smul.u32 16, %s155
          %s157 = ssub.s32 38, %s156
          %p158 = scmp.lt.s32.totalorder %s157, 16
          %s159 = scalar_select %p158, %s157, 16
          %s160 = smul.u32 128, %s159
          %p161 = scmp.ne.s32.totalorder 0, %s160
          %s162 = smul.addr %s156, 3
          %s163 = sadd.s32 %s20, %s162
          %s164 = smul.addr %s163, 8
          %s165 = scalar_lea.vmem %s0, %s164
          // Predicated region
          $region21: #{tpu_custom_call.1} parent=19 // pred_check
            %p166 = pneg %p161
          $region22: #{tpu_custom_call.1} parent=19 // pred_check_branch
            %168 = sbr.rel (%p166) target = $region24
          $region23: #{tpu_custom_call.1} parent=19 // pred_region
            // Predicated region
            $region25: #{tpu_custom_call.1} parent=23 // pred_check
              _
            $region26: #{tpu_custom_call.1} parent=23 // pred_check_branch
              %170 = sbr.rel (0) target = $region28
            $region27: #{tpu_custom_call.1} parent=23 // pred_region
              // Predicated region
              $region47: #{tpu_custom_call.1} parent=27 // pred_check
                _
              $region48: #{tpu_custom_call.1} parent=27 // pred_check_branch
                %250 = sbr.rel (0) target = $region50
              $region49: #{tpu_custom_call.1} parent=27 // pred_region
                %s251 = sshrl.u32 %s159, 4
                // While loop
                $region51: #{tpu_custom_call.1} parent=49 // loop_pre_header
                  _
                $region52: #{tpu_custom_call.1} parent=49 // loop_header
                  %s253 = sphi 0, %s255
                  %p254 = scmp.ge.s32.totalorder %s253, %s251
                  %s258 = sphi 0, %s295
                  %s259 = sphi %s165, %s298
                  %s260 = sphi %s151, %s299
                $region53: #{tpu_custom_call.1} parent=49 // loop_header_branch
                  %257 = sbr.rel (%p254) target = $region57
                $region54: #{tpu_custom_call.1} parent=49 // loop_body
                  %v261 = vld [vmem:[%s259] sm:$0xff]
                  %262 = vst [vmem:[%s260] sm:$0xff] %v261
                  %v263 = vld [vmem:[%s259 + $0x18] sm:$0xff]
                  %264 = vst [vmem:[%s260 + $0x8] sm:$0xff] %v263
                  %v265 = vld [vmem:[%s259 + $0x30] sm:$0xff]
                  %266 = vst [vmem:[%s260 + $0x10] sm:$0xff] %v265
                  %v267 = vld [vmem:[%s259 + $0x48] sm:$0xff]
                  %268 = vst [vmem:[%s260 + $0x18] sm:$0xff] %v267
                  %v269 = vld [vmem:[%s259 + $0x60] sm:$0xff]
                  %270 = vst [vmem:[%s260 + $0x20] sm:$0xff] %v269
                  %v271 = vld [vmem:[%s259 + $0x78] sm:$0xff]
                  %272 = vst [vmem:[%s260 + $0x28] sm:$0xff] %v271
                  %v273 = vld [vmem:[%s259 + $0x90] sm:$0xff]
                  %274 = vst [vmem:[%s260 + $0x30] sm:$0xff] %v273
                  %v275 = vld [vmem:[%s259 + $0xa8] sm:$0xff]
                  %276 = vst [vmem:[%s260 + $0x38] sm:$0xff] %v275
                  %v277 = vld [vmem:[%s259 + $0xc0] sm:$0xff]
                  %278 = vst [vmem:[%s260 + $0x40] sm:$0xff] %v277
                  %v279 = vld [vmem:[%s259 + $0xd8] sm:$0xff]
                  %280 = vst [vmem:[%s260 + $0x48] sm:$0xff] %v279
                  %v281 = vld [vmem:[%s259 + $0xf0] sm:$0xff]
                  %282 = vst [vmem:[%s260 + $0x50] sm:$0xff] %v281
                  %v283 = vld [vmem:[%s259 + $0x108] sm:$0xff]
                  %284 = vst [vmem:[%s260 + $0x58] sm:$0xff] %v283
                  %v285 = vld [vmem:[%s259 + $0x120] sm:$0xff]
                  %286 = vst [vmem:[%s260 + $0x60] sm:$0xff] %v285
                  %v287 = vld [vmem:[%s259 + $0x138] sm:$0xff]
                  %288 = vst [vmem:[%s260 + $0x68] sm:$0xff] %v287
                  %v289 = vld [vmem:[%s259 + $0x150] sm:$0xff]
                  %290 = vst [vmem:[%s260 + $0x70] sm:$0xff] %v289
                  %v291 = vld [vmem:[%s259 + $0x168] sm:$0xff]
                  %292 = vst [vmem:[%s260 + $0x78] sm:$0xff] %v291
                  %s293 = sadd.s32 1, %s258
                  %p294 = scmp.ge.s32.totalorder %s293, %s251
                  %s295 = scalar_select %p294, 0, %s293
                  %s296 = smul.u32 %s295, 384
                  %s297 = smul.u32 %s295, 128
                  %s298 = scalar_lea.vmem %s165, %s296
                  %s299 = scalar_lea.vmem %s151, %s297 [#allocation5]
                $region55: #{tpu_custom_call.1} parent=49 // loop_footer
                  %s255 = sadd.s32 %s253, 1
                $region56: #{tpu_custom_call.1} parent=49 // loop_footer_branch
                  %252 = sbr.rel target = $region52
                $region57: #{tpu_custom_call.1} parent=49 // loop_exit
                  _
                %s300 = sshrl.u32 %s159, 4
                %s301 = sand.u32 %s159, 15
                %s302 = smul.u32 %s300, 16
                %s303 = smul.u32 24, %s302
                %s304 = scalar_lea.vmem %s165, %s303
                %s305 = smul.u32 8, %s302
                %s306 = scalar_lea.vmem %s151, %s305 [#allocation5]
                // While loop
                $region58: #{tpu_custom_call.1} parent=49 // loop_pre_header
                  _
                $region59: #{tpu_custom_call.1} parent=49 // loop_header
                  %s308 = sphi 0, %s310
                  %p309 = scmp.ge.s32.totalorder %s308, %s301
                  %s313 = sphi 0, %s320
                  %s314 = sphi %s304, %s323
                  %s315 = sphi %s306, %s324
                $region60: #{tpu_custom_call.1} parent=49 // loop_header_branch
                  %312 = sbr.rel (%p309) target = $region64
                $region61: #{tpu_custom_call.1} parent=49 // loop_body
                  %v316 = vld [vmem:[%s314] sm:$0xff]
                  %317 = vst [vmem:[%s315] sm:$0xff] %v316
                  %s318 = sadd.s32 1, %s313
                  %p319 = scmp.ge.s32.totalorder %s318, %s301
                  %s320 = scalar_select %p319, 0, %s318
                  %s321 = smul.u32 %s320, 24
                  %s322 = smul.u32 %s320, 8
                  %s323 = scalar_lea.vmem %s304, %s321
                  %s324 = scalar_lea.vmem %s306, %s322 [#allocation5]
                $region62: #{tpu_custom_call.1} parent=49 // loop_footer
                  %s310 = sadd.s32 %s308, 1
                $region63: #{tpu_custom_call.1} parent=49 // loop_footer_branch
                  %307 = sbr.rel target = $region59
                $region64: #{tpu_custom_call.1} parent=49 // loop_exit
                  _
              $region50: #{tpu_custom_call.1} parent=27 // pred_fallthru
                _
              // Predicated region
              $region65: #{tpu_custom_call.1} parent=27 // pred_check
                _
              $region66: #{tpu_custom_call.1} parent=27 // pred_check_branch
                %326 = sbr.rel target = $region68
              $region67: #{tpu_custom_call.1} parent=27 // pred_region
                _
              $region68: #{tpu_custom_call.1} parent=27 // pred_fallthru
                _
            $region28: #{tpu_custom_call.1} parent=23 // pred_fallthru
              _
            // Predicated region
            $region29: #{tpu_custom_call.1} parent=23 // pred_check
              _
            $region30: #{tpu_custom_call.1} parent=23 // pred_check_branch
              %172 = sbr.rel target = $region32
            $region31: #{tpu_custom_call.1} parent=23 // pred_region
              %s174 = ssub.s32 256, 1
              %s175 = sshrl.u32 %s159, 4
              // While loop
              $region33: #{tpu_custom_call.1} parent=31 // loop_pre_header
                _
              $region34: #{tpu_custom_call.1} parent=31 // loop_header
                %s177 = sphi 0, %s179
                %p178 = scmp.ge.s32.totalorder %s177, %s175
                %s182 = sphi 0, %s219
                %s183 = sphi %s165, %s222
                %s184 = sphi %s151, %s223
              $region35: #{tpu_custom_call.1} parent=31 // loop_header_branch
                %181 = sbr.rel (%p178) target = $region39
              $region36: #{tpu_custom_call.1} parent=31 // loop_body
                %v185 = vld [vmem:[%s183] sm:%s174]
                %186 = vst [vmem:[%s184] sm:%s174] %v185
                %v187 = vld [vmem:[%s183 + $0x18] sm:%s174]
                %188 = vst [vmem:[%s184 + $0x8] sm:%s174] %v187
                %v189 = vld [vmem:[%s183 + $0x30] sm:%s174]
                %190 = vst [vmem:[%s184 + $0x10] sm:%s174] %v189
                %v191 = vld [vmem:[%s183 + $0x48] sm:%s174]
                %192 = vst [vmem:[%s184 + $0x18] sm:%s174] %v191
                %v193 = vld [vmem:[%s183 + $0x60] sm:%s174]
                %194 = vst [vmem:[%s184 + $0x20] sm:%s174] %v193
                %v195 = vld [vmem:[%s183 + $0x78] sm:%s174]
                %196 = vst [vmem:[%s184 + $0x28] sm:%s174] %v195
                %v197 = vld [vmem:[%s183 + $0x90] sm:%s174]
                %198 = vst [vmem:[%s184 + $0x30] sm:%s174] %v197
                %v199 = vld [vmem:[%s183 + $0xa8] sm:%s174]
                %200 = vst [vmem:[%s184 + $0x38] sm:%s174] %v199
                %v201 = vld [vmem:[%s183 + $0xc0] sm:%s174]
                %202 = vst [vmem:[%s184 + $0x40] sm:%s174] %v201
                %v203 = vld [vmem:[%s183 + $0xd8] sm:%s174]
                %204 = vst [vmem:[%s184 + $0x48] sm:%s174] %v203
                %v205 = vld [vmem:[%s183 + $0xf0] sm:%s174]
                %206 = vst [vmem:[%s184 + $0x50] sm:%s174] %v205
                %v207 = vld [vmem:[%s183 + $0x108] sm:%s174]
                %208 = vst [vmem:[%s184 + $0x58] sm:%s174] %v207
                %v209 = vld [vmem:[%s183 + $0x120] sm:%s174]
                %210 = vst [vmem:[%s184 + $0x60] sm:%s174] %v209
                %v211 = vld [vmem:[%s183 + $0x138] sm:%s174]
                %212 = vst [vmem:[%s184 + $0x68] sm:%s174] %v211
                %v213 = vld [vmem:[%s183 + $0x150] sm:%s174]
                %214 = vst [vmem:[%s184 + $0x70] sm:%s174] %v213
                %v215 = vld [vmem:[%s183 + $0x168] sm:%s174]
                %216 = vst [vmem:[%s184 + $0x78] sm:%s174] %v215
                %s217 = sadd.s32 1, %s182
                %p218 = scmp.ge.s32.totalorder %s217, %s175
                %s219 = scalar_select %p218, 0, %s217
                %s220 = smul.u32 %s219, 384
                %s221 = smul.u32 %s219, 128
                %s222 = scalar_lea.vmem %s165, %s220
                %s223 = scalar_lea.vmem %s151, %s221 [#allocation5]
              $region37: #{tpu_custom_call.1} parent=31 // loop_footer
                %s179 = sadd.s32 %s177, 1
              $region38: #{tpu_custom_call.1} parent=31 // loop_footer_branch
                %176 = sbr.rel target = $region34
              $region39: #{tpu_custom_call.1} parent=31 // loop_exit
                _
              %s224 = sshrl.u32 %s159, 4
              %s225 = sand.u32 %s159, 15
              %s226 = smul.u32 %s224, 16
              %s227 = smul.u32 24, %s226
              %s228 = scalar_lea.vmem %s165, %s227
              %s229 = smul.u32 8, %s226
              %s230 = scalar_lea.vmem %s151, %s229 [#allocation5]
              // While loop
              $region40: #{tpu_custom_call.1} parent=31 // loop_pre_header
                _
              $region41: #{tpu_custom_call.1} parent=31 // loop_header
                %s232 = sphi 0, %s234
                %p233 = scmp.ge.s32.totalorder %s232, %s225
                %s237 = sphi 0, %s244
                %s238 = sphi %s228, %s247
                %s239 = sphi %s230, %s248
              $region42: #{tpu_custom_call.1} parent=31 // loop_header_branch
                %236 = sbr.rel (%p233) target = $region46
              $region43: #{tpu_custom_call.1} parent=31 // loop_body
                %v240 = vld [vmem:[%s238] sm:%s174]
                %241 = vst [vmem:[%s239] sm:%s174] %v240
                %s242 = sadd.s32 1, %s237
                %p243 = scmp.ge.s32.totalorder %s242, %s225
                %s244 = scalar_select %p243, 0, %s242
                %s245 = smul.u32 %s244, 24
                %s246 = smul.u32 %s244, 8
                %s247 = scalar_lea.vmem %s228, %s245
                %s248 = scalar_lea.vmem %s230, %s246 [#allocation5]
              $region44: #{tpu_custom_call.1} parent=31 // loop_footer
                %s234 = sadd.s32 %s232, 1
              $region45: #{tpu_custom_call.1} parent=31 // loop_footer_branch
                %231 = sbr.rel target = $region41
              $region46: #{tpu_custom_call.1} parent=31 // loop_exit
                _
            $region32: #{tpu_custom_call.1} parent=23 // pred_fallthru
              _
          $region24: #{tpu_custom_call.1} parent=19 // pred_fallthru
            _
          %327 = vnop
        $region20: #{tpu_custom_call.1} parent=15 // pred_fallthru
          _
        // Predicated region
        $region69: #{tpu_custom_call.1} parent=15 // pred_check
          %p328 = pneg %p94
        $region70: #{tpu_custom_call.1} parent=15 // pred_check_branch
          %330 = sbr.rel (%p328) target = $region72
        $region71: #{tpu_custom_call.1} parent=15 // pred_region
          %s331 = smul.u32 %s18, 2
          %s332 = sadd.s32 %s331, %s19
          %p333 = scmp.lt.s32.totalorder %s332, 2
          %s334 = scalar_select %p333, %s332, 2
          %s335 = smul.u32 16, %s334
          %s336 = ssub.s32 38, %s335
          %p337 = scmp.lt.s32.totalorder %s336, 16
          %s338 = scalar_select %p337, %s336, 16
          %s339 = smul.u32 128, %s338
          %p340 = scmp.lt.s32.totalorder %s335, 37
          %s341 = scalar_select %p340, %s335, 37
          %s342 = smul.addr %s341, 8
          %s343 = scalar_lea.vmem %s1, %s342
          %s344 = smul.u32 %s18, 2
          %s345 = sadd.s32 %s344, %s19
          %p346 = scmp.lt.s32.totalorder %s345, 2
          %s347 = scalar_select %p346, %s345, 2
          %s348 = smul.u32 16, %s347
          %s349 = ssub.s32 38, %s348
          %p350 = scmp.lt.s32.totalorder %s349, 16
          %s351 = scalar_select %p350, %s349, 16
          %s352 = smul.u32 128, %s351
        $region72: #{tpu_custom_call.1} parent=15 // pred_fallthru
          _
      $region16: #{tpu_custom_call.1} parent=5 // pred_fallthru
        _
      %p353 = scmp.le.s32.totalorder 1, %s11
      %p354 = scmp.lt.s32.totalorder %s11, 13
      %p355 = pnand %p353, %p354
      %p356 = pneg %p355
      // Predicated region
      $region73: #{tpu_custom_call.1} parent=5 // pred_check
        _
      $region74: #{tpu_custom_call.1} parent=5 // pred_check_branch
        %358 = sbr.rel (%p355) target = $region76
      $region75: #{tpu_custom_call.1} parent=5 // pred_region
        %s359 = ssub.s32 %s11, 1
        %s360 = sand.u32 %s53, 1
        %s361 = sand.u32 %s53, 1
        %s362 = smul.addr %s361, 128
        %s363 = scalar_lea.vmem [#allocation5], %s362
        // Predicated region
        $region77: #{tpu_custom_call.1} parent=75 // pred_check
          %p364 = pneg %p66
        $region78: #{tpu_custom_call.1} parent=75 // pred_check_branch
          %366 = sbr.rel (%p364) target = $region80
        $region79: #{tpu_custom_call.1} parent=75 // pred_region
          _
        $region80: #{tpu_custom_call.1} parent=75 // pred_fallthru
          _
        %s367 = sand.u32 %s53, 1
        %s368 = sand.u32 %s53, 1
        %s369 = smul.addr %s368, 128
        %s370 = scalar_lea.vmem [#allocation5], %s369
        %p371 = pneg %p66
        %p372 = pneg %p63
        %s373 = smul.u32 %s21, 2
        %s374 = sadd.s32 %s373, %s22
        %p375 = scmp.lt.s32.totalorder %s374, 2
        %s376 = scalar_select %p375, %s374, 2
        %s377 = smul.u32 16, %s376
        %s378 = ssub.s32 38, %s377
        %p379 = scmp.lt.s32.totalorder %s378, 16
        %s380 = scalar_select %p379, %s378, 16
        %s381 = smul.u32 128, %s380
        %p382 = scmp.lt.s32.totalorder %s377, 37
        %s383 = scalar_select %p382, %s377, 37
        %s384 = smul.addr %s383, 8
        %s385 = scalar_lea.vmem %s1, %s384
        %p386 = pneg %p100
        %p387 = pneg %p97
        %p388 = pneg %p126
        %p389 = pneg %p123
        %s390 = sand.u32 %s113, 1
        %s391 = scalar_lea.sflag [#allocation7], %s390
        %s392 = sand.u32 %s113, 1
        %s393 = smul.addr %s392, 8
        %s394 = scalar_lea.vmem [#allocation6], %s393
        %s395 = smul.u32 %s21, 2
        %s396 = sadd.s32 %s395, %s22
        %p397 = scmp.lt.s32.totalorder %s396, 2
        %s398 = scalar_select %p397, %s396, 2
        %s399 = smul.u32 16, %s398
        %s400 = ssub.s32 38, %s399
        %p401 = scmp.lt.s32.totalorder %s400, 16
        %s402 = scalar_select %p401, %s400, 16
        %s403 = smul.u32 128, %s402
        %s404 = smul.u32 %s21, 2
        %s405 = sadd.s32 %s404, %s22
        %p406 = scmp.lt.s32.totalorder %s405, 2
        %s407 = scalar_select %p406, %s405, 2
        %s408 = smul.u32 16, %s407
        %s409 = ssub.s32 38, %s408
        %p410 = scmp.lt.s32.totalorder %s409, 16
        %s411 = scalar_select %p410, %s409, 16
        %s412 = smul.u32 128, %s411
        %p413 = scmp.lt.s32.totalorder %s408, 37
        %s414 = scalar_select %p413, %s408, 37
        %s415 = smul.addr %s414, 8
        %s416 = scalar_lea.vmem %s1, %s415
        %s417 = smul.u32 %s21, 2
        %s418 = sadd.s32 %s417, %s22
        %p419 = scmp.lt.s32.totalorder %s418, 2
        %s420 = scalar_select %p419, %s418, 2
        %s421 = smul.u32 16, %s420
        %s422 = ssub.s32 38, %s421
        %p423 = scmp.lt.s32.totalorder %s422, 16
        %s424 = scalar_select %p423, %s422, 16
        %s425 = smul.u32 128, %s424
        %p426 = scmp.eq.s32.totalorder %s22, 0
        %p427 = scmp.eq.s32.totalorder %s23, 0
        %p428 = pnand %p426, %p427
        %p429 = pneg %p428
        // Predicated region
        $region81: #{tpu_custom_call.1} parent=75 // pred_check
          _
        $region82: #{tpu_custom_call.1} parent=75 // pred_check_branch
          %431 = sbr.rel (%p428) target = $region84
        $region83: #{tpu_custom_call.1} parent=75 // pred_region
          %432 = vst [vmem:[%s394] sm:$0xff] 0.0
        $region84: #{tpu_custom_call.1} parent=75 // pred_fallthru
          _
        // Predicated region
        $region85: #{tpu_custom_call.1} parent=75 // pred_check
          %p433 = pneg %p427
        $region86: #{tpu_custom_call.1} parent=75 // pred_check_branch
          %435 = sbr.rel (%p433) target = $region88
        $region87: #{tpu_custom_call.1} parent=75 // pred_region
          %vm436 = vcmask 7168
          %437 = vst.msk [vmem:[#allocation2] sm:$0xff] %vm436, -inf
          %438 = vst.msk [vmem:[#allocation2 + $0x8] sm:$0xff] %vm436, -inf
          %439 = vst.msk [vmem:[#allocation2 + $0x10] sm:$0xff] %vm436, -inf
          %440 = vst.msk [vmem:[#allocation2 + $0x18] sm:$0xff] %vm436, -inf
          %441 = vst.msk [vmem:[#allocation2 + $0x20] sm:$0xff] %vm436, -inf
          %442 = vst.msk [vmem:[#allocation2 + $0x28] sm:$0xff] %vm436, -inf
          %443 = vst.msk [vmem:[#allocation2 + $0x30] sm:$0xff] %vm436, -inf
          %444 = vst.msk [vmem:[#allocation2 + $0x38] sm:$0xff] %vm436, -inf
          %445 = vst.msk [vmem:[#allocation2 + $0x40] sm:$0xff] %vm436, -inf
          %446 = vst.msk [vmem:[#allocation2 + $0x48] sm:$0xff] %vm436, -inf
          %447 = vst.msk [vmem:[#allocation2 + $0x50] sm:$0xff] %vm436, -inf
          %448 = vst.msk [vmem:[#allocation2 + $0x58] sm:$0xff] %vm436, -inf
          %449 = vst.msk [vmem:[#allocation2 + $0x60] sm:$0xff] %vm436, -inf
          %450 = vst.msk [vmem:[#allocation2 + $0x68] sm:$0xff] %vm436, -inf
          %451 = vst.msk [vmem:[#allocation2 + $0x70] sm:$0xff] %vm436, -inf
          %452 = vst.msk [vmem:[#allocation2 + $0x78] sm:$0xff] %vm436, -inf
          %453 = vst.msk [vmem:[#allocation3] sm:$0xff] %vm436, 0.0
          %454 = vst.msk [vmem:[#allocation3 + $0x8] sm:$0xff] %vm436, 0.0
          %455 = vst.msk [vmem:[#allocation3 + $0x10] sm:$0xff] %vm436, 0.0
          %456 = vst.msk [vmem:[#allocation3 + $0x18] sm:$0xff] %vm436, 0.0
          %457 = vst.msk [vmem:[#allocation3 + $0x20] sm:$0xff] %vm436, 0.0
          %458 = vst.msk [vmem:[#allocation3 + $0x28] sm:$0xff] %vm436, 0.0
          %459 = vst.msk [vmem:[#allocation3 + $0x30] sm:$0xff] %vm436, 0.0
          %460 = vst.msk [vmem:[#allocation3 + $0x38] sm:$0xff] %vm436, 0.0
          %461 = vst.msk [vmem:[#allocation3 + $0x40] sm:$0xff] %vm436, 0.0
          %462 = vst.msk [vmem:[#allocation3 + $0x48] sm:$0xff] %vm436, 0.0
          %463 = vst.msk [vmem:[#allocation3 + $0x50] sm:$0xff] %vm436, 0.0
          %464 = vst.msk [vmem:[#allocation3 + $0x58] sm:$0xff] %vm436, 0.0
          %465 = vst.msk [vmem:[#allocation3 + $0x60] sm:$0xff] %vm436, 0.0
          %466 = vst.msk [vmem:[#allocation3 + $0x68] sm:$0xff] %vm436, 0.0
          %467 = vst.msk [vmem:[#allocation3 + $0x70] sm:$0xff] %vm436, 0.0
          %468 = vst.msk [vmem:[#allocation3 + $0x78] sm:$0xff] %vm436, 0.0
          %469 = vst.msk [vmem:[#allocation4] sm:$0xff] %vm436, 0.0
          %470 = vst.msk [vmem:[#allocation4 + $0x8] sm:$0xff] %vm436, 0.0
          %471 = vst.msk [vmem:[#allocation4 + $0x10] sm:$0xff] %vm436, 0.0
          %472 = vst.msk [vmem:[#allocation4 + $0x18] sm:$0xff] %vm436, 0.0
          %473 = vst.msk [vmem:[#allocation4 + $0x20] sm:$0xff] %vm436, 0.0
          %474 = vst.msk [vmem:[#allocation4 + $0x28] sm:$0xff] %vm436, 0.0
          %475 = vst.msk [vmem:[#allocation4 + $0x30] sm:$0xff] %vm436, 0.0
          %476 = vst.msk [vmem:[#allocation4 + $0x38] sm:$0xff] %vm436, 0.0
          %477 = vst.msk [vmem:[#allocation4 + $0x40] sm:$0xff] %vm436, 0.0
          %478 = vst.msk [vmem:[#allocation4 + $0x48] sm:$0xff] %vm436, 0.0
          %479 = vst.msk [vmem:[#allocation4 + $0x50] sm:$0xff] %vm436, 0.0
          %480 = vst.msk [vmem:[#allocation4 + $0x58] sm:$0xff] %vm436, 0.0
          %481 = vst.msk [vmem:[#allocation4 + $0x60] sm:$0xff] %vm436, 0.0
          %482 = vst.msk [vmem:[#allocation4 + $0x68] sm:$0xff] %vm436, 0.0
          %483 = vst.msk [vmem:[#allocation4 + $0x70] sm:$0xff] %vm436, 0.0
          %484 = vst.msk [vmem:[#allocation4 + $0x78] sm:$0xff] %vm436, 0.0
        $region88: #{tpu_custom_call.1} parent=75 // pred_fallthru
          _
        %v485 = vld [vmem:[%s363] sm:$0xff]
        %v486 = vld [vmem:[%s363 + $0x8] sm:$0xff]
        %v487 = vld [vmem:[%s363 + $0x10] sm:$0xff]
        %v488 = vld [vmem:[%s363 + $0x18] sm:$0xff]
        %v489 = vld [vmem:[%s363 + $0x20] sm:$0xff]
        %v490 = vld [vmem:[%s363 + $0x28] sm:$0xff]
        %v491 = vld [vmem:[%s363 + $0x30] sm:$0xff]
        %v492 = vld [vmem:[%s363 + $0x38] sm:$0xff]
        %v493 = vld [vmem:[%s363 + $0x40] sm:$0xff]
        %v494 = vld [vmem:[%s363 + $0x48] sm:$0xff]
        %v495 = vld [vmem:[%s363 + $0x50] sm:$0xff]
        %v496 = vld [vmem:[%s363 + $0x58] sm:$0xff]
        %v497 = vld [vmem:[%s363 + $0x60] sm:$0xff]
        %v498 = vld [vmem:[%s363 + $0x68] sm:$0xff]
        %v499 = vld [vmem:[%s363 + $0x70] sm:$0xff]
        %v500 = vld [vmem:[%s363 + $0x78] sm:$0xff]
        %v501 = vld [vmem:[%s416] sm:$0xff]
        %v502 = vld [vmem:[%s416 + $0x8] sm:$0xff]
        %v503 = vld [vmem:[%s416 + $0x10] sm:$0xff]
        %v504 = vld [vmem:[%s416 + $0x18] sm:$0xff]
        %v505 = vld [vmem:[%s416 + $0x20] sm:$0xff]
        %v506 = vld [vmem:[%s416 + $0x28] sm:$0xff]
        %v507 = vld [vmem:[%s416 + $0x30] sm:$0xff]
        %v508 = vld [vmem:[%s416 + $0x38] sm:$0xff]
        %v509 = vld [vmem:[%s416 + $0x40] sm:$0xff]
        %v510 = vld [vmem:[%s416 + $0x48] sm:$0xff]
        %v511 = vld [vmem:[%s416 + $0x50] sm:$0xff]
        %v512 = vld [vmem:[%s416 + $0x58] sm:$0xff]
        %v513 = vld [vmem:[%s416 + $0x60] sm:$0xff]
        %v514 = vld [vmem:[%s416 + $0x68] sm:$0xff]
        %v515 = vld [vmem:[%s416 + $0x70] sm:$0xff]
        %v516 = vld [vmem:[%s416 + $0x78] sm:$0xff]
        %s517 = smul.u32 %s23, 128
        %v518 = vlaneseq
        %v519 = vand.u32 %v518, 127
        %v520 = vstv %s517
        %v521 = vadd.s32 %v520, %v519
        %vm522 = vcmp.lt.s32.totalorder %v521, 272
        %v523 = vsel %vm522, %v485, -inf
        %v524 = vsel %vm522, %v486, -inf
        %v525 = vsel %vm522, %v487, -inf
        %v526 = vsel %vm522, %v488, -inf
        %v527 = vsel %vm522, %v489, -inf
        %v528 = vsel %vm522, %v490, -inf
        %v529 = vsel %vm522, %v491, -inf
        %v530 = vsel %vm522, %v492, -inf
        %v531 = vsel %vm522, %v493, -inf
        %v532 = vsel %vm522, %v494, -inf
        %v533 = vsel %vm522, %v495, -inf
        %v534 = vsel %vm522, %v496, -inf
        %v535 = vsel %vm522, %v497, -inf
        %v536 = vsel %vm522, %v498, -inf
        %v537 = vsel %vm522, %v499, -inf
        %v538 = vsel %vm522, %v500, -inf
        %v539 = vld [vmem:[#allocation2] sm:$0xff]
        %v540 = vld [vmem:[#allocation2 + $0x8] sm:$0xff]
        %v541 = vld [vmem:[#allocation2 + $0x10] sm:$0xff]
        %v542 = vld [vmem:[#allocation2 + $0x18] sm:$0xff]
        %v543 = vld [vmem:[#allocation2 + $0x20] sm:$0xff]
        %v544 = vld [vmem:[#allocation2 + $0x28] sm:$0xff]
        %v545 = vld [vmem:[#allocation2 + $0x30] sm:$0xff]
        %v546 = vld [vmem:[#allocation2 + $0x38] sm:$0xff]
        %v547 = vld [vmem:[#allocation2 + $0x40] sm:$0xff]
        %v548 = vld [vmem:[#allocation2 + $0x48] sm:$0xff]
        %v549 = vld [vmem:[#allocation2 + $0x50] sm:$0xff]
        %v550 = vld [vmem:[#allocation2 + $0x58] sm:$0xff]
        %v551 = vld [vmem:[#allocation2 + $0x60] sm:$0xff]
        %v552 = vld [vmem:[#allocation2 + $0x68] sm:$0xff]
        %v553 = vld [vmem:[#allocation2 + $0x70] sm:$0xff]
        %v554 = vld [vmem:[#allocation2 + $0x78] sm:$0xff]
        %555 = vmax.xlane.f32.xlu0 %v523
        %v556 = vpop.xlane.xlu0 %555
        %557 = vmax.xlane.f32.xlu0 %v524
        %v558 = vpop.xlane.xlu0 %557
        %559 = vmax.xlane.f32.xlu0 %v525
        %v560 = vpop.xlane.xlu0 %559
        %561 = vmax.xlane.f32.xlu0 %v526
        %v562 = vpop.xlane.xlu0 %561
        %563 = vmax.xlane.f32.xlu0 %v527
        %v564 = vpop.xlane.xlu0 %563
        %565 = vmax.xlane.f32.xlu0 %v528
        %v566 = vpop.xlane.xlu0 %565
        %567 = vmax.xlane.f32.xlu0 %v529
        %v568 = vpop.xlane.xlu0 %567
        %569 = vmax.xlane.f32.xlu0 %v530
        %v570 = vpop.xlane.xlu0 %569
        %571 = vmax.xlane.f32.xlu0 %v531
        %v572 = vpop.xlane.xlu0 %571
        %573 = vmax.xlane.f32.xlu0 %v532
        %v574 = vpop.xlane.xlu0 %573
        %575 = vmax.xlane.f32.xlu0 %v533
        %v576 = vpop.xlane.xlu0 %575
        %577 = vmax.xlane.f32.xlu0 %v534
        %v578 = vpop.xlane.xlu0 %577
        %579 = vmax.xlane.f32.xlu0 %v535
        %v580 = vpop.xlane.xlu0 %579
        %581 = vmax.xlane.f32.xlu0 %v536
        %v582 = vpop.xlane.xlu0 %581
        %583 = vmax.xlane.f32.xlu0 %v537
        %v584 = vpop.xlane.xlu0 %583
        %585 = vmax.xlane.f32.xlu0 %v538
        %v586 = vpop.xlane.xlu0 %585
        %v587 = vmax.f32 %v539, %v556
        %v588 = vmax.f32 %v540, %v558
        %v589 = vmax.f32 %v541, %v560
        %v590 = vmax.f32 %v542, %v562
        %v591 = vmax.f32 %v543, %v564
        %v592 = vmax.f32 %v544, %v566
        %v593 = vmax.f32 %v545, %v568
        %v594 = vmax.f32 %v546, %v570
        %v595 = vmax.f32 %v547, %v572
        %v596 = vmax.f32 %v548, %v574
        %v597 = vmax.f32 %v549, %v576
        %v598 = vmax.f32 %v550, %v578
        %v599 = vmax.f32 %v551, %v580
        %v600 = vmax.f32 %v552, %v582
        %v601 = vmax.f32 %v553, %v584
        %v602 = vmax.f32 %v554, %v586
        %604 = vset.pattern.permute.xlu0 0
        %605 = vperm.xlu0 %604, %v587
        %v606 = vpop.permute.xlu0 %605
        %609 = vset.pattern.permute.xlu0 0
        %610 = vperm.xlu0 %609, %v588
        %v611 = vpop.permute.xlu0 %610
        %614 = vset.pattern.permute.xlu0 0
        %615 = vperm.xlu0 %614, %v589
        %v616 = vpop.permute.xlu0 %615
        %619 = vset.pattern.permute.xlu0 0
        %620 = vperm.xlu0 %619, %v590
        %v621 = vpop.permute.xlu0 %620
        %624 = vset.pattern.permute.xlu0 0
        %625 = vperm.xlu0 %624, %v591
        %v626 = vpop.permute.xlu0 %625
        %629 = vset.pattern.permute.xlu0 0
        %630 = vperm.xlu0 %629, %v592
        %v631 = vpop.permute.xlu0 %630
        %634 = vset.pattern.permute.xlu0 0
        %635 = vperm.xlu0 %634, %v593
        %v636 = vpop.permute.xlu0 %635
        %639 = vset.pattern.permute.xlu0 0
        %640 = vperm.xlu0 %639, %v594
        %v641 = vpop.permute.xlu0 %640
        %644 = vset.pattern.permute.xlu0 0
        %645 = vperm.xlu0 %644, %v595
        %v646 = vpop.permute.xlu0 %645
        %649 = vset.pattern.permute.xlu0 0
        %650 = vperm.xlu0 %649, %v596
        %v651 = vpop.permute.xlu0 %650
        %654 = vset.pattern.permute.xlu0 0
        %655 = vperm.xlu0 %654, %v597
        %v656 = vpop.permute.xlu0 %655
        %659 = vset.pattern.permute.xlu0 0
        %660 = vperm.xlu0 %659, %v598
        %v661 = vpop.permute.xlu0 %660
        %664 = vset.pattern.permute.xlu0 0
        %665 = vperm.xlu0 %664, %v599
        %v666 = vpop.permute.xlu0 %665
        %669 = vset.pattern.permute.xlu0 0
        %670 = vperm.xlu0 %669, %v600
        %v671 = vpop.permute.xlu0 %670
        %674 = vset.pattern.permute.xlu0 0
        %675 = vperm.xlu0 %674, %v601
        %v676 = vpop.permute.xlu0 %675
        %679 = vset.pattern.permute.xlu0 0
        %680 = vperm.xlu0 %679, %v602
        %v681 = vpop.permute.xlu0 %680
        %v683 = vsub.f32 %v523, %v606
        %v684 = vsub.f32 %v524, %v611
        %v685 = vsub.f32 %v525, %v616
        %v686 = vsub.f32 %v526, %v621
        %v687 = vsub.f32 %v527, %v626
        %v688 = vsub.f32 %v528, %v631
        %v689 = vsub.f32 %v529, %v636
        %v690 = vsub.f32 %v530, %v641
        %v691 = vsub.f32 %v531, %v646
        %v692 = vsub.f32 %v532, %v651
        %v693 = vsub.f32 %v533, %v656
        %v694 = vsub.f32 %v534, %v661
        %v695 = vsub.f32 %v535, %v666
        %v696 = vsub.f32 %v536, %v671
        %v697 = vsub.f32 %v537, %v676
        %v698 = vsub.f32 %v538, %v681
        %v699 = vmul.f32 %v683, 1.442695
        %v700 = vpow.pop %v699
        %v701 = vmul.f32 %v684, 1.442695
        %v702 = vpow.pop %v701
        %v703 = vmul.f32 %v685, 1.442695
        %v704 = vpow.pop %v703
        %v705 = vmul.f32 %v686, 1.442695
        %v706 = vpow.pop %v705
        %v707 = vmul.f32 %v687, 1.442695
        %v708 = vpow.pop %v707
        %v709 = vmul.f32 %v688, 1.442695
        %v710 = vpow.pop %v709
        %v711 = vmul.f32 %v689, 1.442695
        %v712 = vpow.pop %v711
        %v713 = vmul.f32 %v690, 1.442695
        %v714 = vpow.pop %v713
        %v715 = vmul.f32 %v691, 1.442695
        %v716 = vpow.pop %v715
        %v717 = vmul.f32 %v692, 1.442695
        %v718 = vpow.pop %v717
        %v719 = vmul.f32 %v693, 1.442695
        %v720 = vpow.pop %v719
        %v721 = vmul.f32 %v694, 1.442695
        %v722 = vpow.pop %v721
        %v723 = vmul.f32 %v695, 1.442695
        %v724 = vpow.pop %v723
        %v725 = vmul.f32 %v696, 1.442695
        %v726 = vpow.pop %v725
        %v727 = vmul.f32 %v697, 1.442695
        %v728 = vpow.pop %v727
        %v729 = vmul.f32 %v698, 1.442695
        %v730 = vpow.pop %v729
        %731 = vadd.xlane.f32.xlu0 %v700
        %v732 = vpop.xlane.xlu0 %731
        %733 = vadd.xlane.f32.xlu0 %v702
        %v734 = vpop.xlane.xlu0 %733
        %735 = vadd.xlane.f32.xlu0 %v704
        %v736 = vpop.xlane.xlu0 %735
        %737 = vadd.xlane.f32.xlu0 %v706
        %v738 = vpop.xlane.xlu0 %737
        %739 = vadd.xlane.f32.xlu0 %v708
        %v740 = vpop.xlane.xlu0 %739
        %741 = vadd.xlane.f32.xlu0 %v710
        %v742 = vpop.xlane.xlu0 %741
        %743 = vadd.xlane.f32.xlu0 %v712
        %v744 = vpop.xlane.xlu0 %743
        %745 = vadd.xlane.f32.xlu0 %v714
        %v746 = vpop.xlane.xlu0 %745
        %747 = vadd.xlane.f32.xlu0 %v716
        %v748 = vpop.xlane.xlu0 %747
        %749 = vadd.xlane.f32.xlu0 %v718
        %v750 = vpop.xlane.xlu0 %749
        %751 = vadd.xlane.f32.xlu0 %v720
        %v752 = vpop.xlane.xlu0 %751
        %753 = vadd.xlane.f32.xlu0 %v722
        %v754 = vpop.xlane.xlu0 %753
        %755 = vadd.xlane.f32.xlu0 %v724
        %v756 = vpop.xlane.xlu0 %755
        %757 = vadd.xlane.f32.xlu0 %v726
        %v758 = vpop.xlane.xlu0 %757
        %759 = vadd.xlane.f32.xlu0 %v728
        %v760 = vpop.xlane.xlu0 %759
        %761 = vadd.xlane.f32.xlu0 %v730
        %v762 = vpop.xlane.xlu0 %761
        %v763 = vsub.f32 %v539, %v587
        %v764 = vsub.f32 %v540, %v588
        %v765 = vsub.f32 %v541, %v589
        %v766 = vsub.f32 %v542, %v590
        %v767 = vsub.f32 %v543, %v591
        %v768 = vsub.f32 %v544, %v592
        %v769 = vsub.f32 %v545, %v593
        %v770 = vsub.f32 %v546, %v594
        %v771 = vsub.f32 %v547, %v595
        %v772 = vsub.f32 %v548, %v596
        %v773 = vsub.f32 %v549, %v597
        %v774 = vsub.f32 %v550, %v598
        %v775 = vsub.f32 %v551, %v599
        %v776 = vsub.f32 %v552, %v600
        %v777 = vsub.f32 %v553, %v601
        %v778 = vsub.f32 %v554, %v602
        %v779 = vmul.f32 %v763, 1.442695
        %v780 = vpow.pop %v779
        %v781 = vmul.f32 %v764, 1.442695
        %v782 = vpow.pop %v781
        %v783 = vmul.f32 %v765, 1.442695
        %v784 = vpow.pop %v783
        %v785 = vmul.f32 %v766, 1.442695
        %v786 = vpow.pop %v785
        %v787 = vmul.f32 %v767, 1.442695
        %v788 = vpow.pop %v787
        %v789 = vmul.f32 %v768, 1.442695
        %v790 = vpow.pop %v789
        %v791 = vmul.f32 %v769, 1.442695
        %v792 = vpow.pop %v791
        %v793 = vmul.f32 %v770, 1.442695
        %v794 = vpow.pop %v793
        %v795 = vmul.f32 %v771, 1.442695
        %v796 = vpow.pop %v795
        %v797 = vmul.f32 %v772, 1.442695
        %v798 = vpow.pop %v797
        %v799 = vmul.f32 %v773, 1.442695
        %v800 = vpow.pop %v799
        %v801 = vmul.f32 %v774, 1.442695
        %v802 = vpow.pop %v801
        %v803 = vmul.f32 %v775, 1.442695
        %v804 = vpow.pop %v803
        %v805 = vmul.f32 %v776, 1.442695
        %v806 = vpow.pop %v805
        %v807 = vmul.f32 %v777, 1.442695
        %v808 = vpow.pop %v807
        %v809 = vmul.f32 %v778, 1.442695
        %v810 = vpow.pop %v809
        %v811 = vld [vmem:[#allocation3] sm:$0xff]
        %v812 = vld [vmem:[#allocation3 + $0x8] sm:$0xff]
        %v813 = vld [vmem:[#allocation3 + $0x10] sm:$0xff]
        %v814 = vld [vmem:[#allocation3 + $0x18] sm:$0xff]
        %v815 = vld [vmem:[#allocation3 + $0x20] sm:$0xff]
        %v816 = vld [vmem:[#allocation3 + $0x28] sm:$0xff]
        %v817 = vld [vmem:[#allocation3 + $0x30] sm:$0xff]
        %v818 = vld [vmem:[#allocation3 + $0x38] sm:$0xff]
        %v819 = vld [vmem:[#allocation3 + $0x40] sm:$0xff]
        %v820 = vld [vmem:[#allocation3 + $0x48] sm:$0xff]
        %v821 = vld [vmem:[#allocation3 + $0x50] sm:$0xff]
        %v822 = vld [vmem:[#allocation3 + $0x58] sm:$0xff]
        %v823 = vld [vmem:[#allocation3 + $0x60] sm:$0xff]
        %v824 = vld [vmem:[#allocation3 + $0x68] sm:$0xff]
        %v825 = vld [vmem:[#allocation3 + $0x70] sm:$0xff]
        %v826 = vld [vmem:[#allocation3 + $0x78] sm:$0xff]
        %v827 = vmul.f32 %v780, %v811
        %v828 = vmul.f32 %v782, %v812
        %v829 = vmul.f32 %v784, %v813
        %v830 = vmul.f32 %v786, %v814
        %v831 = vmul.f32 %v788, %v815
        %v832 = vmul.f32 %v790, %v816
        %v833 = vmul.f32 %v792, %v817
        %v834 = vmul.f32 %v794, %v818
        %v835 = vmul.f32 %v796, %v819
        %v836 = vmul.f32 %v798, %v820
        %v837 = vmul.f32 %v800, %v821
        %v838 = vmul.f32 %v802, %v822
        %v839 = vmul.f32 %v804, %v823
        %v840 = vmul.f32 %v806, %v824
        %v841 = vmul.f32 %v808, %v825
        %v842 = vmul.f32 %v810, %v826
        %v843 = vadd.f32 %v827, %v732
        %v844 = vadd.f32 %v828, %v734
        %v845 = vadd.f32 %v829, %v736
        %v846 = vadd.f32 %v830, %v738
        %v847 = vadd.f32 %v831, %v740
        %v848 = vadd.f32 %v832, %v742
        %v849 = vadd.f32 %v833, %v744
        %v850 = vadd.f32 %v834, %v746
        %v851 = vadd.f32 %v835, %v748
        %v852 = vadd.f32 %v836, %v750
        %v853 = vadd.f32 %v837, %v752
        %v854 = vadd.f32 %v838, %v754
        %v855 = vadd.f32 %v839, %v756
        %v856 = vadd.f32 %v840, %v758
        %v857 = vadd.f32 %v841, %v760
        %v858 = vadd.f32 %v842, %v762
        %vm859 = vcmask 7168
        %860 = vst.msk [vmem:[#allocation3] sm:$0xff] %vm859, %v843
        %861 = vst.msk [vmem:[#allocation3 + $0x8] sm:$0xff] %vm859, %v844
        %862 = vst.msk [vmem:[#allocation3 + $0x10] sm:$0xff] %vm859, %v845
        %863 = vst.msk [vmem:[#allocation3 + $0x18] sm:$0xff] %vm859, %v846
        %864 = vst.msk [vmem:[#allocation3 + $0x20] sm:$0xff] %vm859, %v847
        %865 = vst.msk [vmem:[#allocation3 + $0x28] sm:$0xff] %vm859, %v848
        %866 = vst.msk [vmem:[#allocation3 + $0x30] sm:$0xff] %vm859, %v849
        %867 = vst.msk [vmem:[#allocation3 + $0x38] sm:$0xff] %vm859, %v850
        %868 = vst.msk [vmem:[#allocation3 + $0x40] sm:$0xff] %vm859, %v851
        %869 = vst.msk [vmem:[#allocation3 + $0x48] sm:$0xff] %vm859, %v852
        %870 = vst.msk [vmem:[#allocation3 + $0x50] sm:$0xff] %vm859, %v853
        %871 = vst.msk [vmem:[#allocation3 + $0x58] sm:$0xff] %vm859, %v854
        %872 = vst.msk [vmem:[#allocation3 + $0x60] sm:$0xff] %vm859, %v855
        %873 = vst.msk [vmem:[#allocation3 + $0x68] sm:$0xff] %vm859, %v856
        %874 = vst.msk [vmem:[#allocation3 + $0x70] sm:$0xff] %vm859, %v857
        %875 = vst.msk [vmem:[#allocation3 + $0x78] sm:$0xff] %vm859, %v858
        %876 = vst.msk [vmem:[#allocation2] sm:$0xff] %vm859, %v587
        %877 = vst.msk [vmem:[#allocation2 + $0x8] sm:$0xff] %vm859, %v588
        %878 = vst.msk [vmem:[#allocation2 + $0x10] sm:$0xff] %vm859, %v589
        %879 = vst.msk [vmem:[#allocation2 + $0x18] sm:$0xff] %vm859, %v590
        %880 = vst.msk [vmem:[#allocation2 + $0x20] sm:$0xff] %vm859, %v591
        %881 = vst.msk [vmem:[#allocation2 + $0x28] sm:$0xff] %vm859, %v592
        %882 = vst.msk [vmem:[#allocation2 + $0x30] sm:$0xff] %vm859, %v593
        %883 = vst.msk [vmem:[#allocation2 + $0x38] sm:$0xff] %vm859, %v594
        %884 = vst.msk [vmem:[#allocation2 + $0x40] sm:$0xff] %vm859, %v595
        %885 = vst.msk [vmem:[#allocation2 + $0x48] sm:$0xff] %vm859, %v596
        %886 = vst.msk [vmem:[#allocation2 + $0x50] sm:$0xff] %vm859, %v597
        %887 = vst.msk [vmem:[#allocation2 + $0x58] sm:$0xff] %vm859, %v598
        %888 = vst.msk [vmem:[#allocation2 + $0x60] sm:$0xff] %vm859, %v599
        %889 = vst.msk [vmem:[#allocation2 + $0x68] sm:$0xff] %vm859, %v600
        %890 = vst.msk [vmem:[#allocation2 + $0x70] sm:$0xff] %vm859, %v601
        %891 = vst.msk [vmem:[#allocation2 + $0x78] sm:$0xff] %vm859, %v602
        %v892 = vld [vmem:[#allocation4] sm:$0xff]
        %v893 = vld [vmem:[#allocation4 + $0x8] sm:$0xff]
        %v894 = vld [vmem:[#allocation4 + $0x10] sm:$0xff]
        %v895 = vld [vmem:[#allocation4 + $0x18] sm:$0xff]
        %v896 = vld [vmem:[#allocation4 + $0x20] sm:$0xff]
        %v897 = vld [vmem:[#allocation4 + $0x28] sm:$0xff]
        %v898 = vld [vmem:[#allocation4 + $0x30] sm:$0xff]
        %v899 = vld [vmem:[#allocation4 + $0x38] sm:$0xff]
        %v900 = vld [vmem:[#allocation4 + $0x40] sm:$0xff]
        %v901 = vld [vmem:[#allocation4 + $0x48] sm:$0xff]
        %v902 = vld [vmem:[#allocation4 + $0x50] sm:$0xff]
        %v903 = vld [vmem:[#allocation4 + $0x58] sm:$0xff]
        %v904 = vld [vmem:[#allocation4 + $0x60] sm:$0xff]
        %v905 = vld [vmem:[#allocation4 + $0x68] sm:$0xff]
        %v906 = vld [vmem:[#allocation4 + $0x70] sm:$0xff]
        %v907 = vld [vmem:[#allocation4 + $0x78] sm:$0xff]
        %908 = vset.pattern.permute.xlu0 0
        %909 = vperm.xlu0 %908, %v501
        %v910 = vpop.permute.xlu0 %909
        %911 = vset.pattern.permute.xlu0 0
        %912 = vperm.xlu0 %911, %v502
        %v913 = vpop.permute.xlu0 %912
        %914 = vset.pattern.permute.xlu0 0
        %915 = vperm.xlu0 %914, %v503
        %v916 = vpop.permute.xlu0 %915
        %917 = vset.pattern.permute.xlu0 0
        %918 = vperm.xlu0 %917, %v504
        %v919 = vpop.permute.xlu0 %918
        %920 = vset.pattern.permute.xlu0 0
        %921 = vperm.xlu0 %920, %v505
        %v922 = vpop.permute.xlu0 %921
        %923 = vset.pattern.permute.xlu0 0
        %924 = vperm.xlu0 %923, %v506
        %v925 = vpop.permute.xlu0 %924
        %926 = vset.pattern.permute.xlu0 0
        %927 = vperm.xlu0 %926, %v507
        %v928 = vpop.permute.xlu0 %927
        %929 = vset.pattern.permute.xlu0 0
        %930 = vperm.xlu0 %929, %v508
        %v931 = vpop.permute.xlu0 %930
        %932 = vset.pattern.permute.xlu0 0
        %933 = vperm.xlu0 %932, %v509
        %v934 = vpop.permute.xlu0 %933
        %935 = vset.pattern.permute.xlu0 0
        %936 = vperm.xlu0 %935, %v510
        %v937 = vpop.permute.xlu0 %936
        %938 = vset.pattern.permute.xlu0 0
        %939 = vperm.xlu0 %938, %v511
        %v940 = vpop.permute.xlu0 %939
        %941 = vset.pattern.permute.xlu0 0
        %942 = vperm.xlu0 %941, %v512
        %v943 = vpop.permute.xlu0 %942
        %944 = vset.pattern.permute.xlu0 0
        %945 = vperm.xlu0 %944, %v513
        %v946 = vpop.permute.xlu0 %945
        %947 = vset.pattern.permute.xlu0 0
        %948 = vperm.xlu0 %947, %v514
        %v949 = vpop.permute.xlu0 %948
        %950 = vset.pattern.permute.xlu0 0
        %951 = vperm.xlu0 %950, %v515
        %v952 = vpop.permute.xlu0 %951
        %953 = vset.pattern.permute.xlu0 0
        %954 = vperm.xlu0 %953, %v516
        %v955 = vpop.permute.xlu0 %954
        %vm956 = vcmp.eq.s32.totalorder %v521, %v910
        %vm957 = vcmp.eq.s32.totalorder %v521, %v913
        %vm958 = vcmp.eq.s32.totalorder %v521, %v916
        %vm959 = vcmp.eq.s32.totalorder %v521, %v919
        %vm960 = vcmp.eq.s32.totalorder %v521, %v922
        %vm961 = vcmp.eq.s32.totalorder %v521, %v925
        %vm962 = vcmp.eq.s32.totalorder %v521, %v928
        %vm963 = vcmp.eq.s32.totalorder %v521, %v931
        %vm964 = vcmp.eq.s32.totalorder %v521, %v934
        %vm965 = vcmp.eq.s32.totalorder %v521, %v937
        %vm966 = vcmp.eq.s32.totalorder %v521, %v940
        %vm967 = vcmp.eq.s32.totalorder %v521, %v943
        %vm968 = vcmp.eq.s32.totalorder %v521, %v946
        %vm969 = vcmp.eq.s32.totalorder %v521, %v949
        %vm970 = vcmp.eq.s32.totalorder %v521, %v952
        %vm971 = vcmp.eq.s32.totalorder %v521, %v955
        %v972 = vsel %vm956, %v523, 0.0
        %v973 = vsel %vm957, %v524, 0.0
        %v974 = vsel %vm958, %v525, 0.0
        %v975 = vsel %vm959, %v526, 0.0
        %v976 = vsel %vm960, %v527, 0.0
        %v977 = vsel %vm961, %v528, 0.0
        %v978 = vsel %vm962, %v529, 0.0
        %v979 = vsel %vm963, %v530, 0.0
        %v980 = vsel %vm964, %v531, 0.0
        %v981 = vsel %vm965, %v532, 0.0
        %v982 = vsel %vm966, %v533, 0.0
        %v983 = vsel %vm967, %v534, 0.0
        %v984 = vsel %vm968, %v535, 0.0
        %v985 = vsel %vm969, %v536, 0.0
        %v986 = vsel %vm970, %v537, 0.0
        %v987 = vsel %vm971, %v538, 0.0
        %988 = vadd.xlane.f32.xlu0 %v972
        %v989 = vpop.xlane.xlu0 %988
        %990 = vadd.xlane.f32.xlu0 %v973
        %v991 = vpop.xlane.xlu0 %990
        %992 = vadd.xlane.f32.xlu0 %v974
        %v993 = vpop.xlane.xlu0 %992
        %994 = vadd.xlane.f32.xlu0 %v975
        %v995 = vpop.xlane.xlu0 %994
        %996 = vadd.xlane.f32.xlu0 %v976
        %v997 = vpop.xlane.xlu0 %996
        %998 = vadd.xlane.f32.xlu0 %v977
        %v999 = vpop.xlane.xlu0 %998
        %1000 = vadd.xlane.f32.xlu0 %v978
        %v1001 = vpop.xlane.xlu0 %1000
        %1002 = vadd.xlane.f32.xlu0 %v979
        %v1003 = vpop.xlane.xlu0 %1002
        %1004 = vadd.xlane.f32.xlu0 %v980
        %v1005 = vpop.xlane.xlu0 %1004
        %1006 = vadd.xlane.f32.xlu0 %v981
        %v1007 = vpop.xlane.xlu0 %1006
        %1008 = vadd.xlane.f32.xlu0 %v982
        %v1009 = vpop.xlane.xlu0 %1008
        %1010 = vadd.xlane.f32.xlu0 %v983
        %v1011 = vpop.xlane.xlu0 %1010
        %1012 = vadd.xlane.f32.xlu0 %v984
        %v1013 = vpop.xlane.xlu0 %1012
        %1014 = vadd.xlane.f32.xlu0 %v985
        %v1015 = vpop.xlane.xlu0 %1014
        %1016 = vadd.xlane.f32.xlu0 %v986
        %v1017 = vpop.xlane.xlu0 %1016
        %1018 = vadd.xlane.f32.xlu0 %v987
        %v1019 = vpop.xlane.xlu0 %1018
        %v1020 = vadd.f32 %v892, %v989
        %v1021 = vadd.f32 %v893, %v991
        %v1022 = vadd.f32 %v894, %v993
        %v1023 = vadd.f32 %v895, %v995
        %v1024 = vadd.f32 %v896, %v997
        %v1025 = vadd.f32 %v897, %v999
        %v1026 = vadd.f32 %v898, %v1001
        %v1027 = vadd.f32 %v899, %v1003
        %v1028 = vadd.f32 %v900, %v1005
        %v1029 = vadd.f32 %v901, %v1007
        %v1030 = vadd.f32 %v902, %v1009
        %v1031 = vadd.f32 %v903, %v1011
        %v1032 = vadd.f32 %v904, %v1013
        %v1033 = vadd.f32 %v905, %v1015
        %v1034 = vadd.f32 %v906, %v1017
        %v1035 = vadd.f32 %v907, %v1019
        %1036 = vst.msk [vmem:[#allocation4] sm:$0xff] %vm859, %v1020
        %1037 = vst.msk [vmem:[#allocation4 + $0x8] sm:$0xff] %vm859, %v1021
        %1038 = vst.msk [vmem:[#allocation4 + $0x10] sm:$0xff] %vm859, %v1022
        %1039 = vst.msk [vmem:[#allocation4 + $0x18] sm:$0xff] %vm859, %v1023
        %1040 = vst.msk [vmem:[#allocation4 + $0x20] sm:$0xff] %vm859, %v1024
        %1041 = vst.msk [vmem:[#allocation4 + $0x28] sm:$0xff] %vm859, %v1025
        %1042 = vst.msk [vmem:[#allocation4 + $0x30] sm:$0xff] %vm859, %v1026
        %1043 = vst.msk [vmem:[#allocation4 + $0x38] sm:$0xff] %vm859, %v1027
        %1044 = vst.msk [vmem:[#allocation4 + $0x40] sm:$0xff] %vm859, %v1028
        %1045 = vst.msk [vmem:[#allocation4 + $0x48] sm:$0xff] %vm859, %v1029
        %1046 = vst.msk [vmem:[#allocation4 + $0x50] sm:$0xff] %vm859, %v1030
        %1047 = vst.msk [vmem:[#allocation4 + $0x58] sm:$0xff] %vm859, %v1031
        %1048 = vst.msk [vmem:[#allocation4 + $0x60] sm:$0xff] %vm859, %v1032
        %1049 = vst.msk [vmem:[#allocation4 + $0x68] sm:$0xff] %vm859, %v1033
        %1050 = vst.msk [vmem:[#allocation4 + $0x70] sm:$0xff] %vm859, %v1034
        %1051 = vst.msk [vmem:[#allocation4 + $0x78] sm:$0xff] %vm859, %v1035
        %p1052 = scmp.eq.s32.totalorder %s23, 2
        // Predicated region
        $region89: #{tpu_custom_call.1} parent=75 // pred_check
          %p1053 = pneg %p1052
        $region90: #{tpu_custom_call.1} parent=75 // pred_check_branch
          %1055 = sbr.rel (%p1053) target = $region92
        $region91: #{tpu_custom_call.1} parent=75 // pred_region
          %v1056 = vld [vmem:[#allocation2] sm:$0xff]
          %v1057 = vld [vmem:[#allocation2 + $0x8] sm:$0xff]
          %v1058 = vld [vmem:[#allocation2 + $0x10] sm:$0xff]
          %v1059 = vld [vmem:[#allocation2 + $0x18] sm:$0xff]
          %v1060 = vld [vmem:[#allocation2 + $0x20] sm:$0xff]
          %v1061 = vld [vmem:[#allocation2 + $0x28] sm:$0xff]
          %v1062 = vld [vmem:[#allocation2 + $0x30] sm:$0xff]
          %v1063 = vld [vmem:[#allocation2 + $0x38] sm:$0xff]
          %v1064 = vld [vmem:[#allocation2 + $0x40] sm:$0xff]
          %v1065 = vld [vmem:[#allocation2 + $0x48] sm:$0xff]
          %v1066 = vld [vmem:[#allocation2 + $0x50] sm:$0xff]
          %v1067 = vld [vmem:[#allocation2 + $0x58] sm:$0xff]
          %v1068 = vld [vmem:[#allocation2 + $0x60] sm:$0xff]
          %v1069 = vld [vmem:[#allocation2 + $0x68] sm:$0xff]
          %v1070 = vld [vmem:[#allocation2 + $0x70] sm:$0xff]
          %v1071 = vld [vmem:[#allocation2 + $0x78] sm:$0xff]
          %v1072 = vld [vmem:[#allocation3] sm:$0xff]
          %v1073 = vld [vmem:[#allocation3 + $0x8] sm:$0xff]
          %v1074 = vld [vmem:[#allocation3 + $0x10] sm:$0xff]
          %v1075 = vld [vmem:[#allocation3 + $0x18] sm:$0xff]
          %v1076 = vld [vmem:[#allocation3 + $0x20] sm:$0xff]
          %v1077 = vld [vmem:[#allocation3 + $0x28] sm:$0xff]
          %v1078 = vld [vmem:[#allocation3 + $0x30] sm:$0xff]
          %v1079 = vld [vmem:[#allocation3 + $0x38] sm:$0xff]
          %v1080 = vld [vmem:[#allocation3 + $0x40] sm:$0xff]
          %v1081 = vld [vmem:[#allocation3 + $0x48] sm:$0xff]
          %v1082 = vld [vmem:[#allocation3 + $0x50] sm:$0xff]
          %v1083 = vld [vmem:[#allocation3 + $0x58] sm:$0xff]
          %v1084 = vld [vmem:[#allocation3 + $0x60] sm:$0xff]
          %v1085 = vld [vmem:[#allocation3 + $0x68] sm:$0xff]
          %v1086 = vld [vmem:[#allocation3 + $0x70] sm:$0xff]
          %v1087 = vld [vmem:[#allocation3 + $0x78] sm:$0xff]
          %v1088 = vlog2.pop %v1072
          %v1089 = vmul.f32 %v1088, 0.6931472
          %v1090 = vlog2.pop %v1073
          %v1091 = vmul.f32 %v1090, 0.6931472
          %v1092 = vlog2.pop %v1074
          %v1093 = vmul.f32 %v1092, 0.6931472
          %v1094 = vlog2.pop %v1075
          %v1095 = vmul.f32 %v1094, 0.6931472
          %v1096 = vlog2.pop %v1076
          %v1097 = vmul.f32 %v1096, 0.6931472
          %v1098 = vlog2.pop %v1077
          %v1099 = vmul.f32 %v1098, 0.6931472
          %v1100 = vlog2.pop %v1078
          %v1101 = vmul.f32 %v1100, 0.6931472
          %v1102 = vlog2.pop %v1079
          %v1103 = vmul.f32 %v1102, 0.6931472
          %v1104 = vlog2.pop %v1080
          %v1105 = vmul.f32 %v1104, 0.6931472
          %v1106 = vlog2.pop %v1081
          %v1107 = vmul.f32 %v1106, 0.6931472
          %v1108 = vlog2.pop %v1082
          %v1109 = vmul.f32 %v1108, 0.6931472
          %v1110 = vlog2.pop %v1083
          %v1111 = vmul.f32 %v1110, 0.6931472
          %v1112 = vlog2.pop %v1084
          %v1113 = vmul.f32 %v1112, 0.6931472
          %v1114 = vlog2.pop %v1085
          %v1115 = vmul.f32 %v1114, 0.6931472
          %v1116 = vlog2.pop %v1086
          %v1117 = vmul.f32 %v1116, 0.6931472
          %v1118 = vlog2.pop %v1087
          %v1119 = vmul.f32 %v1118, 0.6931472
          %v1120 = vadd.f32 %v1056, %v1089
          %v1121 = vadd.f32 %v1057, %v1091
          %v1122 = vadd.f32 %v1058, %v1093
          %v1123 = vadd.f32 %v1059, %v1095
          %v1124 = vadd.f32 %v1060, %v1097
          %v1125 = vadd.f32 %v1061, %v1099
          %v1126 = vadd.f32 %v1062, %v1101
          %v1127 = vadd.f32 %v1063, %v1103
          %v1128 = vadd.f32 %v1064, %v1105
          %v1129 = vadd.f32 %v1065, %v1107
          %v1130 = vadd.f32 %v1066, %v1109
          %v1131 = vadd.f32 %v1067, %v1111
          %v1132 = vadd.f32 %v1068, %v1113
          %v1133 = vadd.f32 %v1069, %v1115
          %v1134 = vadd.f32 %v1070, %v1117
          %v1135 = vadd.f32 %v1071, %v1119
          %v1136 = vld [vmem:[#allocation4] sm:$0xff]
          %v1137 = vld [vmem:[#allocation4 + $0x8] sm:$0xff]
          %v1138 = vld [vmem:[#allocation4 + $0x10] sm:$0xff]
          %v1139 = vld [vmem:[#allocation4 + $0x18] sm:$0xff]
          %v1140 = vld [vmem:[#allocation4 + $0x20] sm:$0xff]
          %v1141 = vld [vmem:[#allocation4 + $0x28] sm:$0xff]
          %v1142 = vld [vmem:[#allocation4 + $0x30] sm:$0xff]
          %v1143 = vld [vmem:[#allocation4 + $0x38] sm:$0xff]
          %v1144 = vld [vmem:[#allocation4 + $0x40] sm:$0xff]
          %v1145 = vld [vmem:[#allocation4 + $0x48] sm:$0xff]
          %v1146 = vld [vmem:[#allocation4 + $0x50] sm:$0xff]
          %v1147 = vld [vmem:[#allocation4 + $0x58] sm:$0xff]
          %v1148 = vld [vmem:[#allocation4 + $0x60] sm:$0xff]
          %v1149 = vld [vmem:[#allocation4 + $0x68] sm:$0xff]
          %v1150 = vld [vmem:[#allocation4 + $0x70] sm:$0xff]
          %v1151 = vld [vmem:[#allocation4 + $0x78] sm:$0xff]
          %v1152 = vsub.f32 %v1120, %v1136
          %v1153 = vsub.f32 %v1121, %v1137
          %v1154 = vsub.f32 %v1122, %v1138
          %v1155 = vsub.f32 %v1123, %v1139
          %v1156 = vsub.f32 %v1124, %v1140
          %v1157 = vsub.f32 %v1125, %v1141
          %v1158 = vsub.f32 %v1126, %v1142
          %v1159 = vsub.f32 %v1127, %v1143
          %v1160 = vsub.f32 %v1128, %v1144
          %v1161 = vsub.f32 %v1129, %v1145
          %v1162 = vsub.f32 %v1130, %v1146
          %v1163 = vsub.f32 %v1131, %v1147
          %v1164 = vsub.f32 %v1132, %v1148
          %v1165 = vsub.f32 %v1133, %v1149
          %v1166 = vsub.f32 %v1134, %v1150
          %v1167 = vsub.f32 %v1135, %v1151
          %s1168 = smul.u32 %s21, 2
          %s1169 = sadd.s32 %s1168, %s22
          %s1170 = smul.u32 %s1169, 128
          %v1171 = vlaneseq
          %v1172 = vshrl.u32 %v1171, 7
          %v1173 = vadd.s32 %v1172, 8
          %v1174 = vadd.s32 %v1172, 16
          %v1175 = vadd.s32 %v1172, 24
          %v1176 = vadd.s32 %v1172, 32
          %v1177 = vadd.s32 %v1172, 40
          %v1178 = vadd.s32 %v1172, 48
          %v1179 = vadd.s32 %v1172, 56
          %v1180 = vadd.s32 %v1172, 64
          %v1181 = vadd.s32 %v1172, 72
          %v1182 = vadd.s32 %v1172, 80
          %v1183 = vadd.s32 %v1172, 88
          %v1184 = vadd.s32 %v1172, 96
          %v1185 = vadd.s32 %v1172, 104
          %v1186 = vadd.s32 %v1172, 112
          %v1187 = vadd.s32 %v1172, 120
          %v1188 = vstv %s1170
          %v1189 = vadd.s32 %v1188, %v1172
          %v1190 = vadd.s32 %v1188, %v1173
          %v1191 = vadd.s32 %v1188, %v1174
          %v1192 = vadd.s32 %v1188, %v1175
          %v1193 = vadd.s32 %v1188, %v1176
          %v1194 = vadd.s32 %v1188, %v1177
          %v1195 = vadd.s32 %v1188, %v1178
          %v1196 = vadd.s32 %v1188, %v1179
          %v1197 = vadd.s32 %v1188, %v1180
          %v1198 = vadd.s32 %v1188, %v1181
          %v1199 = vadd.s32 %v1188, %v1182
          %v1200 = vadd.s32 %v1188, %v1183
          %v1201 = vadd.s32 %v1188, %v1184
          %v1202 = vadd.s32 %v1188, %v1185
          %v1203 = vadd.s32 %v1188, %v1186
          %v1204 = vadd.s32 %v1188, %v1187
          %vm1205 = vcmp.lt.s32.totalorder %v1189, 304
          %vm1206 = vcmp.lt.s32.totalorder %v1190, 304
          %vm1207 = vcmp.lt.s32.totalorder %v1191, 304
          %vm1208 = vcmp.lt.s32.totalorder %v1192, 304
          %vm1209 = vcmp.lt.s32.totalorder %v1193, 304
          %vm1210 = vcmp.lt.s32.totalorder %v1194, 304
          %vm1211 = vcmp.lt.s32.totalorder %v1195, 304
          %vm1212 = vcmp.lt.s32.totalorder %v1196, 304
          %vm1213 = vcmp.lt.s32.totalorder %v1197, 304
          %vm1214 = vcmp.lt.s32.totalorder %v1198, 304
          %vm1215 = vcmp.lt.s32.totalorder %v1199, 304
          %vm1216 = vcmp.lt.s32.totalorder %v1200, 304
          %vm1217 = vcmp.lt.s32.totalorder %v1201, 304
          %vm1218 = vcmp.lt.s32.totalorder %v1202, 304
          %vm1219 = vcmp.lt.s32.totalorder %v1203, 304
          %vm1220 = vcmp.lt.s32.totalorder %v1204, 304
          %v1221 = vsel %vm1205, %v1152, 0.0
          %v1222 = vsel %vm1206, %v1153, 0.0
          %v1223 = vsel %vm1207, %v1154, 0.0
          %v1224 = vsel %vm1208, %v1155, 0.0
          %v1225 = vsel %vm1209, %v1156, 0.0
          %v1226 = vsel %vm1210, %v1157, 0.0
          %v1227 = vsel %vm1211, %v1158, 0.0
          %v1228 = vsel %vm1212, %v1159, 0.0
          %v1229 = vsel %vm1213, %v1160, 0.0
          %v1230 = vsel %vm1214, %v1161, 0.0
          %v1231 = vsel %vm1215, %v1162, 0.0
          %v1232 = vsel %vm1216, %v1163, 0.0
          %v1233 = vsel %vm1217, %v1164, 0.0
          %v1234 = vsel %vm1218, %v1165, 0.0
          %v1235 = vsel %vm1219, %v1166, 0.0
          %v1236 = vsel %vm1220, %v1167, 0.0
          %v1237 = vld [vmem:[%s394] sm:$0xff]
          %v1238 = vsel %vm859, %v1221, 0.0
          %v1239 = vsel %vm859, %v1222, 0.0
          %v1240 = vadd.f32 %v1238, %v1239
          %v1241 = vsel %vm859, %v1223, 0.0
          %v1242 = vadd.f32 %v1240, %v1241
          %v1243 = vsel %vm859, %v1224, 0.0
          %v1244 = vadd.f32 %v1242, %v1243
          %v1245 = vsel %vm859, %v1225, 0.0
          %v1246 = vadd.f32 %v1244, %v1245
          %v1247 = vsel %vm859, %v1226, 0.0
          %v1248 = vadd.f32 %v1246, %v1247
          %v1249 = vsel %vm859, %v1227, 0.0
          %v1250 = vadd.f32 %v1248, %v1249
          %v1251 = vsel %vm859, %v1228, 0.0
          %v1252 = vadd.f32 %v1250, %v1251
          %v1253 = vsel %vm859, %v1229, 0.0
          %v1254 = vadd.f32 %v1252, %v1253
          %v1255 = vsel %vm859, %v1230, 0.0
          %v1256 = vadd.f32 %v1254, %v1255
          %v1257 = vsel %vm859, %v1231, 0.0
          %v1258 = vadd.f32 %v1256, %v1257
          %v1259 = vsel %vm859, %v1232, 0.0
          %v1260 = vadd.f32 %v1258, %v1259
          %v1261 = vsel %vm859, %v1233, 0.0
          %v1262 = vadd.f32 %v1260, %v1261
          %v1263 = vsel %vm859, %v1234, 0.0
          %v1264 = vadd.f32 %v1262, %v1263
          %v1265 = vsel %vm859, %v1235, 0.0
          %v1266 = vadd.f32 %v1264, %v1265
          %v1267 = vsel %vm859, %v1236, 0.0
          %v1268 = vadd.f32 %v1266, %v1267
          %1269 = vadd.xlane.f32.xlu0 %v1268
          %v1270 = vpop.xlane.xlu0 %1269
          %v1271 = vrot.slane %v1270, 4
          %v1272 = vadd.f32 %v1270, %v1271
          %v1273 = vrot.slane %v1272, 2
          %v1274 = vadd.f32 %v1272, %v1273
          %v1275 = vrot.slane %v1274, 1
          %v1276 = vadd.f32 %v1274, %v1275
          %s1277 = vtos %v1276
          %v1278 = vstv %s1277
          %v1279 = vadd.f32 %v1237, %v1278
          %1280 = vst [vmem:[%s394] sm:$0xff] %v1279
        $region92: #{tpu_custom_call.1} parent=75 // pred_fallthru
          _
        %s1281 = sand.u32 %s113, 1
        %s1282 = scalar_lea.sflag [#allocation7], %s1281
        %s1283 = sand.u32 %s113, 1
        %s1284 = smul.addr %s1283, 8
        %s1285 = scalar_lea.vmem [#allocation6], %s1284
        // Predicated region
        $region93: #{tpu_custom_call.1} parent=75 // pred_check
          %p1286 = pneg %p123
        $region94: #{tpu_custom_call.1} parent=75 // pred_check_branch
          %1288 = sbr.rel (%p1286) target = $region96
        $region95: #{tpu_custom_call.1} parent=75 // pred_region
          %s1290 = ssub.s32 128, 128
          %1291 = vsyncadd %s1282, %s1290
          %s1292 = smul.addr %s21, 128
          %s1293 = scalar_lea.hbm %s2, %s1292
          %s1295 = sshll.u32 %s1285, 4
          %s1296 = int_to_ptr.vmem [resolvable:$true] %s1295
          %1298 = dma.vmem_to_hbm [thread:$0]  %s1296, 128, %s1293, %s1282
        $region96: #{tpu_custom_call.1} parent=75 // pred_fallthru
          _
      $region76: #{tpu_custom_call.1} parent=5 // pred_fallthru
        _
      %p1299 = scmp.le.s32.totalorder 2, %s11
      // Predicated region
      $region97: #{tpu_custom_call.1} parent=5 // pred_check
        %p1300 = pneg %p1299
      $region98: #{tpu_custom_call.1} parent=5 // pred_check_branch
        %1302 = sbr.rel (%p1300) target = $region100
      $region99: #{tpu_custom_call.1} parent=5 // pred_region
        %s1303 = ssub.s32 %s11, 2
        // Predicated region
        $region101: #{tpu_custom_call.1} parent=99 // pred_check
          %p1304 = pneg %p129
        $region102: #{tpu_custom_call.1} parent=99 // pred_check_branch
          %1306 = sbr.rel (%p1304) target = $region104
        $region103: #{tpu_custom_call.1} parent=99 // pred_region
          %s1307 = sand.u32 %s114, 1
          %s1308 = scalar_lea.sflag [#allocation7], %s1307
          %s1309 = sand.u32 %s114, 1
          %s1310 = smul.addr %s1309, 8
          %s1311 = scalar_lea.vmem [#allocation6], %s1310
          %1312 = dma.done %s1308, 128
        $region104: #{tpu_custom_call.1} parent=99 // pred_fallthru
          _
      $region100: #{tpu_custom_call.1} parent=5 // pred_fallthru
        _
    $region6: #{tpu_custom_call.1} parent=1 // loop_footer
      %s15 = sadd.s32 1, %s11
    $region7: #{tpu_custom_call.1} parent=1 // loop_footer_branch
      %10 = sbr.rel target = $region3
    $region8: #{tpu_custom_call.1} parent=1 // loop_exit
      _
    %1313 = vsyncpa [#allocation7], 1
    %s1314 = scalar_lea.sflag [#allocation7], 1
    %1315 = vsyncpa %s1314, 1

</llo_original>
